<compile_context>
chip_gen: v5e
topology: v5e:2x2
jax: 0.10.0
libtpu: 0.0.40
codegen_flags: <defaults>
</compile_context>

<pallas_src>
import functools

import jax
import jax.numpy as jnp
from jax.experimental import pallas as pl


# ----------------------------------------------------------------------------
# Model constants (match the PyTorch Encoder defaults, sigmoidout=False)
# ----------------------------------------------------------------------------
DIM = 24
RECURRENT_HIDDEN = 8
NUM_LAYERS = 2
CONTINUOUS_INPUT_DIM = 32
HIDDEN_DIM = 8 * DIM          # 192
OUTPUT_DIM = DIM              # 24


def _relu(x):
    return jnp.maximum(x, 0.0)


def _dot(a, b):
    return jnp.dot(a, b, preferred_element_type=jnp.float32)


def _round8(r):
    return -(-r // 8) * 8


# ----------------------------------------------------------------------------
# Host-side parameter packing (done ONCE, outside the hot path)
# ----------------------------------------------------------------------------
def _gate_expand(m, H, d):
    """Place [r|z|n]-ordered gate blocks of one direction into the interleaved
    combined column layout [r_f r_b | z_f z_b | n_f n_b]; d=0 fwd, d=1 bwd."""
    rows = m.shape[0]
    out = jnp.zeros((rows, 6 * H), jnp.float32)
    for g in range(3):
        out = out.at[:, (2 * g + d) * H:(2 * g + d + 1) * H].set(
            m[:, g * H:(g + 1) * H])
    return out


def pack_encoder_params(params, input_dict):
    """Pack every weight/bias into one contiguous f32 slab + static layout."""
    H = RECURRENT_HIDDEN
    C = CONTINUOUS_INPUT_DIM

    discrete = list(input_dict['discrete'])
    continuous = list(input_dict['continuous'])
    text = list(input_dict['text'].keys())
    onehot = list(input_dict['onehot'].keys())
    mlp_names = discrete + continuous + onehot
    mlp_dins = ([1] * (len(discrete) + len(continuous))
                + [int(input_dict['onehot'][n]) for n in onehot])

    blocks = []   # (name, 2-D array)

    # --- merged per-feature MLP branches: block-diagonal layers 1 & 2 -------
    din_tot = sum(mlp_dins)
    nC = len(mlp_names) * C
    w1 = jnp.zeros((din_tot, nC), jnp.float32)
    b1 = jnp.zeros((1, nC), jnp.float32)
    w2 = jnp.zeros((nC, nC), jnp.float32)
    b2 = jnp.zeros((1, nC), jnp.float32)
    r0 = 0
    for i, (name, din) in enumerate(zip(mlp_names, mlp_dins)):
        p = params['input_layers'][name]
        w1 = w1.at[r0:r0 + din, i * C:(i + 1) * C].set(p['w1'])
        b1 = b1.at[:, i * C:(i + 1) * C].set(p['b1'])
        w2 = w2.at[i * C:(i + 1) * C, i * C:(i + 1) * C].set(p['w2'])
        b2 = b2.at[:, i * C:(i + 1) * C].set(p['b2'])
        r0 += din
    blocks += [('mlp_w1', w1), ('mlp_b1', b1), ('mlp_w2', w2), ('mlp_b2', b2)]

    # --- text branches: combined-gate GRU weights + output projection ------
    n_layers_map = {}
    for name in text:
        p = params['input_layers'][name]
        n_layers_map[name] = len(p['gru_layers'])
        for l, lp in enumerate(p['gru_layers']):
            wi = jnp.concatenate([_gate_expand(lp['fwd']['wi'], H, 0),
                                  _gate_expand(lp['bwd']['wi'], H, 1)], axis=1)
            wh = jnp.concatenate([_gate_expand(lp['fwd']['wh'], H, 0),
                                  _gate_expand(lp['bwd']['wh'], H, 1)], axis=0)
            bi = (_gate_expand(lp['fwd']['bi'], H, 0)
                  + _gate_expand(lp['bwd']['bi'], H, 1))
            bh = (_gate_expand(lp['fwd']['bh'], H, 0)
                  + _gate_expand(lp['bwd']['bh'], H, 1))
            blocks += [(f'{name}_wi{l}', wi), (f'{name}_bi{l}', bi),
                       (f'{name}_wh{l}', wh), (f'{name}_bh{l}', bh)]
        blocks += [(f'{name}_wt', p['w']), (f'{name}_bt', p['b'])]

    # --- head: wm1 rows reordered & split per branch group (kills x_cat) ---
    order = discrete + continuous + text + onehot     # torch concat order
    row_of = {n: i * C for i, n in enumerate(order)}
    wm1 = params['wm1']
    wm1_mlp = jnp.concatenate([wm1[row_of[n]:row_of[n] + C, :]
                               for n in mlp_names], axis=0)
    blocks += [('wm1_mlp', wm1_mlp)]
    for name in text:
        blocks += [(f'wm1_{name}', wm1[row_of[name]:row_of[name] + C, :])]
    blocks += [('bm1', params['bm1'])]

    # wm2 split into two 96-wide halves; wo decomposed over matching rows.
    half = params['wm2'].shape[1] // 2
    blocks += [('wm2a', params['wm2'][:, :half]), ('wm2b', params['wm2'][:, half:]),
               ('bm2a', params['bm2'][:, :half]), ('bm2b', params['bm2'][:, half:]),
               ('woa', params['wo'][:half, :]), ('wob', params['wo'][half:, :]),
               ('bo', params['bo'])]

    width = max(int(a.shape[1]) for _, a in blocks)
    layout, padded, row_off = {}, [], 0
    for name, arr in blocks:
        arr = jnp.asarray(arr, jnp.float32)
        r, c = int(arr.shape[0]), int(arr.shape[1])
        rp = _round8(r)                          # 8-row alignment per block
        buf = jnp.zeros((rp, width), jnp.float32).at[:r, :c].set(arr)
        layout[name] = (row_off, r, c)
        padded.append(buf)
        row_off += rp
    slab = jnp.concatenate(padded, axis=0)

    meta = dict(layout=layout,
                mlp_names=tuple(mlp_names), mlp_dins=tuple(mlp_dins),
                text_names=tuple(text), n_layers=n_layers_map,
                H=H, C=C, out_dim=int(params['wo'].shape[1]))
    return slab, meta


# ----------------------------------------------------------------------------
# In-kernel bidirectional GRU layer (fwd+bwd fused into one (B, 2H) state)
# ----------------------------------------------------------------------------
def _bigru_layer(gi_t, bi, wh, bh, B, H, T):
    """gi_t[t]: (B, 2G) hoisted input projection of the layer input at TIME t
    (cols 0:G fwd-direction gates, G:2G bwd-direction gates, interleaved
    layout [r_f r_b | z_f z_b | n_f n_b]).  Returns per-STEP states:
    steps[s] = [h_fwd(time s) | h_bwd(time T-1-s)]  (B, 2H)."""
    G = 6 * H
    steps = []
    h = None
    for s in range(T):
        gi = gi_t[s][:, 0:G] + gi_t[T - 1 - s][:, G:2 * G] + bi
        if s == 0:
            gh = jnp.broadcast_to(bh, (B, G))        # h0 == 0: skip the matmul
        else:
            gh = _dot(h, wh) + bh
        rz = jax.nn.sigmoid(gi[:, 0:4 * H] + gh[:, 0:4 * H])
        r, z = rz[:, 0:2 * H], rz[:, 2 * H:4 * H]
        n = jnp.tanh(gi[:, 4 * H:6 * H] + r * gh[:, 4 * H:6 * H])
        h = (1.0 - z) * n if s == 0 else (1.0 - z) * n + z * h
        steps.append(h)
    return steps


# ----------------------------------------------------------------------------
# Fused Pallas forward (hot path)
# ----------------------------------------------------------------------------
def encoder_forward(slab, inputs, *, meta):
    layout = meta['layout']
    H = meta['H']
    G = 6 * H
    mlp_names, text_names = meta['mlp_names'], meta['text_names']
    out_dim = meta['out_dim']

    # Pack tiny scalar/one-hot inputs into one (B, sum(din)) array host-side.
    cols = []
    for name in mlp_names:
        x = inputs[name]
        x = (x.reshape(x.shape[0], -1) if x.ndim > 1
             else x.reshape(-1, 1)).astype(jnp.float32)    # PlaceHolder
        cols.append(x)
    x_mlp = jnp.concatenate(cols, axis=1) if len(cols) > 1 else cols[0]
    B = x_mlp.shape[0]

    # Time-major (T*B, E) text inputs -> clean static per-step sublane slices
    # of the hoisted input projection inside the kernel.
    x_texts, text_TE = [], []
    for name in text_names:
        x = inputs[name].astype(jnp.float32)               # (B, T, E)
        _, T, E = x.shape
        x_texts.append(jnp.transpose(x, (1, 0, 2)).reshape(T * B, E))
        text_TE.append((T, E))

    def kernel(slab_ref, xm_ref, *rest):
        xt_refs = rest[:len(text_names)]
        out_ref = rest[-1]

        def get(name):
            r0, nr, nc = layout[name]
            return slab_ref[r0:r0 + nr, 0:nc]

        # --- fused per-feature MLP branches (block-diagonal, 2 matmuls) ----
        h = _relu(_dot(xm_ref[...], get('mlp_w1')) + get('mlp_b1'))
        h_mlp = _relu(_dot(h, get('mlp_w2')) + get('mlp_b2'))    # (B, n_mlp*C)

        # Head layer 1 accumulates branch-by-branch (no x_cat concat).
        m1 = _dot(h_mlp, get('wm1_mlp')) + get('bm1')

        # --- text branches: n-layer bidirectional GRU, all in vregs --------
        for ti, name in enumerate(text_names):
            T, E = text_TE[ti]
            n_layers = meta['n_layers'][name]
            # Hoisted layer-0 input projection: one (T*B,E)@(E,2G) matmul.
            gi_all = _dot(xt_refs[ti][...], get(f'{name}_wi0'))   # (T*B, 2G)
            gi_t = [gi_all[s * B:(s + 1) * B, :] for s in range(T)]
            finals = []
            for l in range(n_layers):
                steps = _bigru_layer(gi_t, get(f'{name}_bi{l}'),
                                     get(f'{name}_wh{l}'), get(f'{name}_bh{l}'),
                                     B, H, T)
                finals.append(steps[T - 1])     # = [h_f_final | h_b_final]
                if l + 1 < n_layers:
                    # Next-layer input projection decomposed over the fwd/bwd
                    # row blocks of wi (no per-step [y_f|y_b] concat).
                    hall = jnp.concatenate(steps, axis=0)         # (T*B, 2H)
                    wi = get(f'{name}_wi{l + 1}')                 # (2H, 2G)
                    a = _dot(hall[:, 0:H], wi[0:H, :])            # fwd half
                    b = _dot(hall[:, H:2 * H], wi[H:2 * H, :])    # bwd half
                    gi_t = [a[t * B:(t + 1) * B, :]
                            + b[(T - 1 - t) * B:(T - t) * B, :]
                            for t in range(T)]
            # SelectItem(1) -> SwapAxes -> Flatten -> Linear -> ReLU,
            # decomposed over the h_n row blocks of the projection weight.
            wt = get(f'{name}_wt')
            acc = get(f'{name}_bt')
            for l in range(n_layers):
                acc = acc + _dot(finals[l], wt[l * 2 * H:(l + 1) * 2 * H, :])
            t_out = _relu(acc)
            m1 = m1 + _dot(t_out, get(f'wm1_{name}'))

        # --- main + out head (dropout = identity) ---------------------------
        m1 = _relu(m1)
        m2a = _relu(_dot(m1, get('wm2a')) + get('bm2a'))
        m2b = _relu(_dot(m1, get('wm2b')) + get('bm2b'))
        out_ref[...] = _dot(m2a, get('woa')) + _dot(m2b, get('wob')) + get('bo')

    return pl.pallas_call(
        kernel,
        out_shape=jax.ShapeDtypeStruct((B, out_dim), jnp.float32),
    )(slab, x_mlp, *x_texts)


# ----------------------------------------------------------------------------
# Parameter construction (deterministic, synthetic, canonical PyTorch layout)
# ----------------------------------------------------------------------------
def _lin(key, din, dout, scale=0.1):
    kw, kb = jax.random.split(key)
    return (scale * jax.random.normal(kw, (din, dout), jnp.float32),
            scale * jax.random.normal(kb, (1, dout), jnp.float32))


def _gru_dir(key, din, h, scale=0.1):
    """One GRU direction with gate-fused weights, gate order [r | z | n]."""
    ks = jax.random.split(key, 4)
    return dict(
        wi=scale * jax.random.normal(ks[0], (din, 3 * h), jnp.float32),
        wh=scale * jax.random.normal(ks[1], (h, 3 * h), jnp.float32),
        bi=scale * jax.random.normal(ks[2], (1, 3 * h), jnp.float32),
        bh=scale * jax.random.normal(ks[3], (1, 3 * h), jnp.float32),
    )


def init_encoder_params(key, input_dict):
    ctr = [0]

    def nxt():
        ctr[0] += 1
        return jax.random.fold_in(key, ctr[0])

    n_inputs = (len(input_dict['discrete']) + len(input_dict['continuous'])
                + len(input_dict['text']) + len(input_dict['onehot']))
    input_size = n_inputs * CONTINUOUS_INPUT_DIM

    params = {'input_layers': {}}

    for name in list(input_dict['discrete']) + list(input_dict['continuous']):
        w1, b1 = _lin(nxt(), 1, CONTINUOUS_INPUT_DIM)
        w2, b2 = _lin(nxt(), CONTINUOUS_INPUT_DIM, CONTINUOUS_INPUT_DIM)
        params['input_layers'][name] = dict(w1=w1, b1=b1, w2=w2, b2=b2)

    for name, emb in input_dict['text'].items():
        layers = []
        din = emb
        for _ in range(NUM_LAYERS):
            layers.append({'fwd': _gru_dir(nxt(), din, RECURRENT_HIDDEN),
                           'bwd': _gru_dir(nxt(), din, RECURRENT_HIDDEN)})
            din = 2 * RECURRENT_HIDDEN
        w, b = _lin(nxt(), RECURRENT_HIDDEN * 2 * NUM_LAYERS, CONTINUOUS_INPUT_DIM)
        params['input_layers'][name] = dict(gru_layers=layers, w=w, b=b)

    for name, emb in input_dict['onehot'].items():
        w1, b1 = _lin(nxt(), emb, CONTINUOUS_INPUT_DIM)
        w2, b2 = _lin(nxt(), CONTINUOUS_INPUT_DIM, CONTINUOUS_INPUT_DIM)
        params['input_layers'][name] = dict(w1=w1, b1=b1, w2=w2, b2=b2)

    params['wm1'], params['bm1'] = _lin(nxt(), input_size, HIDDEN_DIM // 2)
    params['wm2'], params['bm2'] = _lin(nxt(), HIDDEN_DIM // 2, HIDDEN_DIM)
    params['wo'], params['bo'] = _lin(nxt(), HIDDEN_DIM, OUTPUT_DIM)
    return params


# ----------------------------------------------------------------------------
# Pure-JAX reference (classic per-gate GRU math) for correctness checking
# ----------------------------------------------------------------------------
def _ref_mlp2(x, p):
    h = jnp.maximum(x @ p['w1'] + p['b1'], 0.0)
    return jnp.maximum(h @ p['w2'] + p['b2'], 0.0)


def _ref_gru_dir(x_tm, p):
    T, B, _ = x_tm.shape
    H = p['wh'].shape[0]
    wir, wiz, win = p['wi'][:, :H], p['wi'][:, H:2 * H], p['wi'][:, 2 * H:]
    whr, whz, whn = p['wh'][:, :H], p['wh'][:, H:2 * H], p['wh'][:, 2 * H:]
    bir, biz, bin_ = p['bi'][:, :H], p['bi'][:, H:2 * H], p['bi'][:, 2 * H:]
    bhr, bhz, bhn = p['bh'][:, :H], p['bh'][:, H:2 * H], p['bh'][:, 2 * H:]
    h = jnp.zeros((B, H), jnp.float32)
    ys = []
    for t in range(T):
        x_t = x_tm[t]
        r = jax.nn.sigmoid(x_t @ wir + bir + h @ whr + bhr)
        z = jax.nn.sigmoid(x_t @ wiz + biz + h @ whz + bhz)
        n = jnp.tanh(x_t @ win + bin_ + r * (h @ whn + bhn))
        h = (1.0 - z) * n + z * h
        ys.append(h)
    return jnp.stack(ys, 0), h


def _ref_bigru(x_bt, gru_layers):
    x_tm = jnp.transpose(x_bt, (1, 0, 2))
    inp = x_tm
    hs = []
    for lp in gru_layers:
        y_f, h_f = _ref_gru_dir(inp, lp['fwd'])
        y_b_rev, h_b = _ref_gru_dir(inp[::-1], lp['bwd'])
        inp = jnp.concatenate([y_f, y_b_rev[::-1]], axis=-1)
        hs.extend([h_f, h_b])
    h_n = jnp.stack(hs, 0)                                  # (L*2, B, H)
    return jnp.transpose(h_n, (1, 0, 2)).reshape(x_bt.shape[0], -1)


def encoder_forward_ref(params, inputs, input_dict):
    pre = []
    for name in input_dict['discrete']:
        x = inputs[name]
        x = x.reshape(-1, 1) if x.ndim == 1 else x
        pre.append(_ref_mlp2(x, params['input_layers'][name]))
    for name in input_dict['continuous']:
        x = inputs[name]
        x = x.reshape(-1, 1) if x.ndim == 1 else x
        pre.append(_ref_mlp2(x, params['input_layers'][name]))
    for name in input_dict['text'].keys():
        p = params['input_layers'][name]
        h_flat = _ref_bigru(inputs[name], p['gru_layers'])
        pre.append(jnp.maximum(h_flat @ p['w'] + p['b'], 0.0))
    for name in input_dict['onehot'].keys():
        pre.append(_ref_mlp2(inputs[name], params['input_layers'][name]))
    x = jnp.concatenate(pre, axis=1)
    h1 = jnp.maximum(x @ params['wm1'] + params['bm1'], 0.0)
    h2 = jnp.maximum(h1 @ params['wm2'] + params['bm2'], 0.0)
    return h2 @ params['wo'] + params['bo']


# ----------------------------------------------------------------------------
# main
# ----------------------------------------------------------------------------
if __name__ == "__main__":
    input_dict = {
        'discrete': ['d0'],
        'continuous': ['c0'],
        'text': {'t0': 8},     # name -> embedding size fed to the GRU
        'onehot': {'o0': 5},   # name -> one-hot width
    }

    B, T = 2, 6
    key = jax.random.PRNGKey(0)
    kp, kd, kc, kt, ko = jax.random.split(key, 5)

    params = init_encoder_params(kp, input_dict)

    inputs = {
        'd0': jax.random.randint(kd, (B,), 0, 5).astype(jnp.float32),    # (B,)
        'c0': jax.random.normal(kc, (B,), jnp.float32),                   # (B,)
        't0': jax.random.normal(kt, (B, T, 8), jnp.float32),              # (B, T, E)
        'o0': jax.nn.one_hot(jax.random.randint(ko, (B,), 0, 5), 5,
                             dtype=jnp.float32),                          # (B, 5)
    }

    # One-time host-side packing of all weights into a single slab.
    slab, meta = pack_encoder_params(params, input_dict)

    fwd = jax.jit(functools.partial(encoder_forward, meta=meta))
    out = jax.block_until_ready(fwd(slab, inputs))
    assert out.shape == (B, OUTPUT_DIM), out.shape
    assert bool(jnp.all(jnp.isfinite(out)))

    ref = jax.block_until_ready(encoder_forward_ref(params, inputs, input_dict))
    # Tightened from 1e-2 -> 1e-4 (catches gate-order / weight-packing bugs);
    # kept slightly above 1e-5 for Mosaic-vs-XLA transcendental differences.
    assert jnp.allclose(out, ref, rtol=1e-4, atol=1e-4), \
        float(jnp.max(jnp.abs(out - ref)))

    print("KERNEL_OK")
</pallas_src>

<mosaic_0001>
module attributes {stable_mosaic.version = 11 : i64} {
  func.func @kernel(%arg0: memref<792x96xf32, #tpu.memory_space<vmem>>, %arg1: memref<2x7xf32, #tpu.memory_space<vmem>>, %arg2: memref<12x8xf32, #tpu.memory_space<vmem>>, %arg3: memref<2x24xf32, #tpu.memory_space<vmem>>) attributes {dimension_semantics = [], scalar_prefetch = 0 : i64, scratch_operands = 0 : i64, tpu.core_type = #tpu.core_type<tc>} {
    %c0 = arith.constant 0 : index
    %c0_0 = arith.constant 0 : index
    %0 = vector.load %arg1[%c0, %c0_0] : memref<2x7xf32, #tpu.memory_space<vmem>>, vector<2x7xf32>
    %c0_1 = arith.constant 0 : index
    %c0_2 = arith.constant 0 : index
    %1 = vector.load %arg0[%c0_1, %c0_2] : memref<792x96xf32, #tpu.memory_space<vmem>>, vector<7x96xf32>
    %cst = arith.constant dense<0.000000e+00> : vector<2x96xf32>
    %2 = tpu.matmul %0, %1, %cst {dimension_numbers = #tpu.dot_dimension_numbers<[1], [0], [0], [1], [0, 0, 1, 1], [], []>} : vector<2x7xf32>, vector<7x96xf32>, vector<2x96xf32> -> vector<2x96xf32>
    %c8 = arith.constant 8 : index
    %c0_3 = arith.constant 0 : index
    %3 = vector.load %arg0[%c8, %c0_3] : memref<792x96xf32, #tpu.memory_space<vmem>>, vector<1x96xf32>
    %4 = vector.broadcast %3 : vector<1x96xf32> to vector<2x96xf32>
    %5 = arith.addf %2, %4 : vector<2x96xf32>
    %cst_4 = arith.constant 0.000000e+00 : f32
    %6 = vector.broadcast %cst_4 : f32 to vector<2x96xf32>
    %7 = arith.maximumf %5, %6 : vector<2x96xf32>
    %c16 = arith.constant 16 : index
    %c0_5 = arith.constant 0 : index
    %8 = vector.load %arg0[%c16, %c0_5] : memref<792x96xf32, #tpu.memory_space<vmem>>, vector<96x96xf32>
    %cst_6 = arith.constant dense<0.000000e+00> : vector<2x96xf32>
    %9 = tpu.matmul %7, %8, %cst_6 {dimension_numbers = #tpu.dot_dimension_numbers<[1], [0], [0], [1], [0, 0, 1, 1], [], []>} : vector<2x96xf32>, vector<96x96xf32>, vector<2x96xf32> -> vector<2x96xf32>
    %c112 = arith.constant 112 : index
    %c0_7 = arith.constant 0 : index
    %10 = vector.load %arg0[%c112, %c0_7] : memref<792x96xf32, #tpu.memory_space<vmem>>, vector<1x96xf32>
    %11 = vector.broadcast %10 : vector<1x96xf32> to vector<2x96xf32>
    %12 = arith.addf %9, %11 : vector<2x96xf32>
    %cst_8 = arith.constant 0.000000e+00 : f32
    %13 = vector.broadcast %cst_8 : f32 to vector<2x96xf32>
    %14 = arith.maximumf %12, %13 : vector<2x96xf32>
    %c248 = arith.constant 248 : index
    %c0_9 = arith.constant 0 : index
    %15 = vector.load %arg0[%c248, %c0_9] : memref<792x96xf32, #tpu.memory_space<vmem>>, vector<96x96xf32>
    %cst_10 = arith.constant dense<0.000000e+00> : vector<2x96xf32>
    %16 = tpu.matmul %14, %15, %cst_10 {dimension_numbers = #tpu.dot_dimension_numbers<[1], [0], [0], [1], [0, 0, 1, 1], [], []>} : vector<2x96xf32>, vector<96x96xf32>, vector<2x96xf32> -> vector<2x96xf32>
    %c376 = arith.constant 376 : index
    %c0_11 = arith.constant 0 : index
    %17 = vector.load %arg0[%c376, %c0_11] : memref<792x96xf32, #tpu.memory_space<vmem>>, vector<1x96xf32>
    %18 = vector.broadcast %17 : vector<1x96xf32> to vector<2x96xf32>
    %19 = arith.addf %16, %18 : vector<2x96xf32>
    %c0_12 = arith.constant 0 : index
    %c0_13 = arith.constant 0 : index
    %20 = vector.load %arg2[%c0_12, %c0_13] : memref<12x8xf32, #tpu.memory_space<vmem>>, vector<12x8xf32>
    %c120 = arith.constant 120 : index
    %c0_14 = arith.constant 0 : index
    %21 = vector.load %arg0[%c120, %c0_14] : memref<792x96xf32, #tpu.memory_space<vmem>>, vector<8x96xf32>
    %cst_15 = arith.constant dense<0.000000e+00> : vector<12x96xf32>
    %22 = tpu.matmul %20, %21, %cst_15 {dimension_numbers = #tpu.dot_dimension_numbers<[1], [0], [0], [1], [0, 0, 1, 1], [], []>} : vector<12x8xf32>, vector<8x96xf32>, vector<12x96xf32> -> vector<12x96xf32>
    %23 = vector.extract_strided_slice %22 {offsets = [0, 0], sizes = [2, 96], strides = [1, 1]} : vector<12x96xf32> to vector<2x96xf32>
    %24 = vector.extract_strided_slice %22 {offsets = [2, 0], sizes = [2, 96], strides = [1, 1]} : vector<12x96xf32> to vector<2x96xf32>
    %25 = vector.extract_strided_slice %22 {offsets = [4, 0], sizes = [2, 96], strides = [1, 1]} : vector<12x96xf32> to vector<2x96xf32>
    %26 = vector.extract_strided_slice %22 {offsets = [6, 0], sizes = [2, 96], strides = [1, 1]} : vector<12x96xf32> to vector<2x96xf32>
    %27 = vector.extract_strided_slice %22 {offsets = [8, 0], sizes = [2, 96], strides = [1, 1]} : vector<12x96xf32> to vector<2x96xf32>
    %28 = vector.extract_strided_slice %22 {offsets = [10, 0], sizes = [2, 96], strides = [1, 1]} : vector<12x96xf32> to vector<2x96xf32>
    %c128 = arith.constant 128 : index
    %c0_16 = arith.constant 0 : index
    %29 = vector.load %arg0[%c128, %c0_16] : memref<792x96xf32, #tpu.memory_space<vmem>>, vector<1x48xf32>
    %c136 = arith.constant 136 : index
    %c0_17 = arith.constant 0 : index
    %30 = vector.load %arg0[%c136, %c0_17] : memref<792x96xf32, #tpu.memory_space<vmem>>, vector<16x48xf32>
    %c152 = arith.constant 152 : index
    %c0_18 = arith.constant 0 : index
    %31 = vector.load %arg0[%c152, %c0_18] : memref<792x96xf32, #tpu.memory_space<vmem>>, vector<1x48xf32>
    %32 = vector.extract_strided_slice %23 {offsets = [0, 0], sizes = [2, 48], strides = [1, 1]} : vector<2x96xf32> to vector<2x48xf32>
    %33 = vector.extract_strided_slice %28 {offsets = [0, 48], sizes = [2, 48], strides = [1, 1]} : vector<2x96xf32> to vector<2x48xf32>
    %34 = arith.addf %32, %33 : vector<2x48xf32>
    %35 = vector.broadcast %29 : vector<1x48xf32> to vector<2x48xf32>
    %36 = arith.addf %34, %35 : vector<2x48xf32>
    %37 = vector.shape_cast %31 : vector<1x48xf32> to vector<1x48xf32>
    %38 = vector.broadcast %37 : vector<1x48xf32> to vector<2x48xf32>
    %39 = vector.extract_strided_slice %36 {offsets = [0, 0], sizes = [2, 32], strides = [1, 1]} : vector<2x48xf32> to vector<2x32xf32>
    %40 = vector.extract_strided_slice %38 {offsets = [0, 0], sizes = [2, 32], strides = [1, 1]} : vector<2x48xf32> to vector<2x32xf32>
    %41 = arith.addf %39, %40 : vector<2x32xf32>
    %42 = arith.negf %41 : vector<2x32xf32>
    %43 = math.exp %42 : vector<2x32xf32>
    %cst_19 = arith.constant 1.000000e+00 : f32
    %44 = vector.broadcast %cst_19 : f32 to vector<2x32xf32>
    %45 = arith.addf %44, %43 : vector<2x32xf32>
    %46 = arith.divf %44, %45 : vector<2x32xf32>
    %47 = vector.extract_strided_slice %46 {offsets = [0, 0], sizes = [2, 16], strides = [1, 1]} : vector<2x32xf32> to vector<2x16xf32>
    %48 = vector.extract_strided_slice %46 {offsets = [0, 16], sizes = [2, 16], strides = [1, 1]} : vector<2x32xf32> to vector<2x16xf32>
    %49 = vector.extract_strided_slice %36 {offsets = [0, 32], sizes = [2, 16], strides = [1, 1]} : vector<2x48xf32> to vector<2x16xf32>
    %50 = vector.extract_strided_slice %38 {offsets = [0, 32], sizes = [2, 16], strides = [1, 1]} : vector<2x48xf32> to vector<2x16xf32>
    %51 = arith.mulf %47, %50 : vector<2x16xf32>
    %52 = arith.addf %49, %51 : vector<2x16xf32>
    %53 = math.tanh %52 : vector<2x16xf32>
    %cst_20 = arith.constant 1.000000e+00 : f32
    %54 = vector.broadcast %cst_20 : f32 to vector<2x16xf32>
    %55 = arith.subf %54, %48 : vector<2x16xf32>
    %56 = arith.mulf %55, %53 : vector<2x16xf32>
    %57 = vector.extract_strided_slice %24 {offsets = [0, 0], sizes = [2, 48], strides = [1, 1]} : vector<2x96xf32> to vector<2x48xf32>
    %58 = vector.extract_strided_slice %27 {offsets = [0, 48], sizes = [2, 48], strides = [1, 1]} : vector<2x96xf32> to vector<2x48xf32>
    %59 = arith.addf %57, %58 : vector<2x48xf32>
    %60 = vector.broadcast %29 : vector<1x48xf32> to vector<2x48xf32>
    %61 = arith.addf %59, %60 : vector<2x48xf32>
    %cst_21 = arith.constant dense<0.000000e+00> : vector<2x48xf32>
    %62 = tpu.matmul %56, %30, %cst_21 {dimension_numbers = #tpu.dot_dimension_numbers<[1], [0], [0], [1], [0, 0, 1, 1], [], []>} : vector<2x16xf32>, vector<16x48xf32>, vector<2x48xf32> -> vector<2x48xf32>
    %63 = vector.broadcast %31 : vector<1x48xf32> to vector<2x48xf32>
    %64 = arith.addf %62, %63 : vector<2x48xf32>
    %65 = vector.extract_strided_slice %61 {offsets = [0, 0], sizes = [2, 32], strides = [1, 1]} : vector<2x48xf32> to vector<2x32xf32>
    %66 = vector.extract_strided_slice %64 {offsets = [0, 0], sizes = [2, 32], strides = [1, 1]} : vector<2x48xf32> to vector<2x32xf32>
    %67 = arith.addf %65, %66 : vector<2x32xf32>
    %68 = arith.negf %67 : vector<2x32xf32>
    %69 = math.exp %68 : vector<2x32xf32>
    %cst_22 = arith.constant 1.000000e+00 : f32
    %70 = vector.broadcast %cst_22 : f32 to vector<2x32xf32>
    %71 = arith.addf %70, %69 : vector<2x32xf32>
    %72 = arith.divf %70, %71 : vector<2x32xf32>
    %73 = vector.extract_strided_slice %72 {offsets = [0, 0], sizes = [2, 16], strides = [1, 1]} : vector<2x32xf32> to vector<2x16xf32>
    %74 = vector.extract_strided_slice %72 {offsets = [0, 16], sizes = [2, 16], strides = [1, 1]} : vector<2x32xf32> to vector<2x16xf32>
    %75 = vector.extract_strided_slice %61 {offsets = [0, 32], sizes = [2, 16], strides = [1, 1]} : vector<2x48xf32> to vector<2x16xf32>
    %76 = vector.extract_strided_slice %64 {offsets = [0, 32], sizes = [2, 16], strides = [1, 1]} : vector<2x48xf32> to vector<2x16xf32>
    %77 = arith.mulf %73, %76 : vector<2x16xf32>
    %78 = arith.addf %75, %77 : vector<2x16xf32>
    %79 = math.tanh %78 : vector<2x16xf32>
    %cst_23 = arith.constant 1.000000e+00 : f32
    %80 = vector.broadcast %cst_23 : f32 to vector<2x16xf32>
    %81 = arith.subf %80, %74 : vector<2x16xf32>
    %82 = arith.mulf %81, %79 : vector<2x16xf32>
    %83 = arith.mulf %74, %56 : vector<2x16xf32>
    %84 = arith.addf %82, %83 : vector<2x16xf32>
    %85 = vector.extract_strided_slice %25 {offsets = [0, 0], sizes = [2, 48], strides = [1, 1]} : vector<2x96xf32> to vector<2x48xf32>
    %86 = vector.extract_strided_slice %26 {offsets = [0, 48], sizes = [2, 48], strides = [1, 1]} : vector<2x96xf32> to vector<2x48xf32>
    %87 = arith.addf %85, %86 : vector<2x48xf32>
    %88 = vector.broadcast %29 : vector<1x48xf32> to vector<2x48xf32>
    %89 = arith.addf %87, %88 : vector<2x48xf32>
    %cst_24 = arith.constant dense<0.000000e+00> : vector<2x48xf32>
    %90 = tpu.matmul %84, %30, %cst_24 {dimension_numbers = #tpu.dot_dimension_numbers<[1], [0], [0], [1], [0, 0, 1, 1], [], []>} : vector<2x16xf32>, vector<16x48xf32>, vector<2x48xf32> -> vector<2x48xf32>
    %91 = vector.broadcast %31 : vector<1x48xf32> to vector<2x48xf32>
    %92 = arith.addf %90, %91 : vector<2x48xf32>
    %93 = vector.extract_strided_slice %89 {offsets = [0, 0], sizes = [2, 32], strides = [1, 1]} : vector<2x48xf32> to vector<2x32xf32>
    %94 = vector.extract_strided_slice %92 {offsets = [0, 0], sizes = [2, 32], strides = [1, 1]} : vector<2x48xf32> to vector<2x32xf32>
    %95 = arith.addf %93, %94 : vector<2x32xf32>
    %96 = arith.negf %95 : vector<2x32xf32>
    %97 = math.exp %96 : vector<2x32xf32>
    %cst_25 = arith.constant 1.000000e+00 : f32
    %98 = vector.broadcast %cst_25 : f32 to vector<2x32xf32>
    %99 = arith.addf %98, %97 : vector<2x32xf32>
    %100 = arith.divf %98, %99 : vector<2x32xf32>
    %101 = vector.extract_strided_slice %100 {offsets = [0, 0], sizes = [2, 16], strides = [1, 1]} : vector<2x32xf32> to vector<2x16xf32>
    %102 = vector.extract_strided_slice %100 {offsets = [0, 16], sizes = [2, 16], strides = [1, 1]} : vector<2x32xf32> to vector<2x16xf32>
    %103 = vector.extract_strided_slice %89 {offsets = [0, 32], sizes = [2, 16], strides = [1, 1]} : vector<2x48xf32> to vector<2x16xf32>
    %104 = vector.extract_strided_slice %92 {offsets = [0, 32], sizes = [2, 16], strides = [1, 1]} : vector<2x48xf32> to vector<2x16xf32>
    %105 = arith.mulf %101, %104 : vector<2x16xf32>
    %106 = arith.addf %103, %105 : vector<2x16xf32>
    %107 = math.tanh %106 : vector<2x16xf32>
    %cst_26 = arith.constant 1.000000e+00 : f32
    %108 = vector.broadcast %cst_26 : f32 to vector<2x16xf32>
    %109 = arith.subf %108, %102 : vector<2x16xf32>
    %110 = arith.mulf %109, %107 : vector<2x16xf32>
    %111 = arith.mulf %102, %84 : vector<2x16xf32>
    %112 = arith.addf %110, %111 : vector<2x16xf32>
    %113 = vector.extract_strided_slice %26 {offsets = [0, 0], sizes = [2, 48], strides = [1, 1]} : vector<2x96xf32> to vector<2x48xf32>
    %114 = vector.extract_strided_slice %25 {offsets = [0, 48], sizes = [2, 48], strides = [1, 1]} : vector<2x96xf32> to vector<2x48xf32>
    %115 = arith.addf %113, %114 : vector<2x48xf32>
    %116 = vector.broadcast %29 : vector<1x48xf32> to vector<2x48xf32>
    %117 = arith.addf %115, %116 : vector<2x48xf32>
    %cst_27 = arith.constant dense<0.000000e+00> : vector<2x48xf32>
    %118 = tpu.matmul %112, %30, %cst_27 {dimension_numbers = #tpu.dot_dimension_numbers<[1], [0], [0], [1], [0, 0, 1, 1], [], []>} : vector<2x16xf32>, vector<16x48xf32>, vector<2x48xf32> -> vector<2x48xf32>
    %119 = vector.broadcast %31 : vector<1x48xf32> to vector<2x48xf32>
    %120 = arith.addf %118, %119 : vector<2x48xf32>
    %121 = vector.extract_strided_slice %117 {offsets = [0, 0], sizes = [2, 32], strides = [1, 1]} : vector<2x48xf32> to vector<2x32xf32>
    %122 = vector.extract_strided_slice %120 {offsets = [0, 0], sizes = [2, 32], strides = [1, 1]} : vector<2x48xf32> to vector<2x32xf32>
    %123 = arith.addf %121, %122 : vector<2x32xf32>
    %124 = arith.negf %123 : vector<2x32xf32>
    %125 = math.exp %124 : vector<2x32xf32>
    %cst_28 = arith.constant 1.000000e+00 : f32
    %126 = vector.broadcast %cst_28 : f32 to vector<2x32xf32>
    %127 = arith.addf %126, %125 : vector<2x32xf32>
    %128 = arith.divf %126, %127 : vector<2x32xf32>
    %129 = vector.extract_strided_slice %128 {offsets = [0, 0], sizes = [2, 16], strides = [1, 1]} : vector<2x32xf32> to vector<2x16xf32>
    %130 = vector.extract_strided_slice %128 {offsets = [0, 16], sizes = [2, 16], strides = [1, 1]} : vector<2x32xf32> to vector<2x16xf32>
    %131 = vector.extract_strided_slice %117 {offsets = [0, 32], sizes = [2, 16], strides = [1, 1]} : vector<2x48xf32> to vector<2x16xf32>
    %132 = vector.extract_strided_slice %120 {offsets = [0, 32], sizes = [2, 16], strides = [1, 1]} : vector<2x48xf32> to vector<2x16xf32>
    %133 = arith.mulf %129, %132 : vector<2x16xf32>
    %134 = arith.addf %131, %133 : vector<2x16xf32>
    %135 = math.tanh %134 : vector<2x16xf32>
    %cst_29 = arith.constant 1.000000e+00 : f32
    %136 = vector.broadcast %cst_29 : f32 to vector<2x16xf32>
    %137 = arith.subf %136, %130 : vector<2x16xf32>
    %138 = arith.mulf %137, %135 : vector<2x16xf32>
    %139 = arith.mulf %130, %112 : vector<2x16xf32>
    %140 = arith.addf %138, %139 : vector<2x16xf32>
    %141 = vector.extract_strided_slice %27 {offsets = [0, 0], sizes = [2, 48], strides = [1, 1]} : vector<2x96xf32> to vector<2x48xf32>
    %142 = vector.extract_strided_slice %24 {offsets = [0, 48], sizes = [2, 48], strides = [1, 1]} : vector<2x96xf32> to vector<2x48xf32>
    %143 = arith.addf %141, %142 : vector<2x48xf32>
    %144 = vector.broadcast %29 : vector<1x48xf32> to vector<2x48xf32>
    %145 = arith.addf %143, %144 : vector<2x48xf32>
    %cst_30 = arith.constant dense<0.000000e+00> : vector<2x48xf32>
    %146 = tpu.matmul %140, %30, %cst_30 {dimension_numbers = #tpu.dot_dimension_numbers<[1], [0], [0], [1], [0, 0, 1, 1], [], []>} : vector<2x16xf32>, vector<16x48xf32>, vector<2x48xf32> -> vector<2x48xf32>
    %147 = vector.broadcast %31 : vector<1x48xf32> to vector<2x48xf32>
    %148 = arith.addf %146, %147 : vector<2x48xf32>
    %149 = vector.extract_strided_slice %145 {offsets = [0, 0], sizes = [2, 32], strides = [1, 1]} : vector<2x48xf32> to vector<2x32xf32>
    %150 = vector.extract_strided_slice %148 {offsets = [0, 0], sizes = [2, 32], strides = [1, 1]} : vector<2x48xf32> to vector<2x32xf32>
    %151 = arith.addf %149, %150 : vector<2x32xf32>
    %152 = arith.negf %151 : vector<2x32xf32>
    %153 = math.exp %152 : vector<2x32xf32>
    %cst_31 = arith.constant 1.000000e+00 : f32
    %154 = vector.broadcast %cst_31 : f32 to vector<2x32xf32>
    %155 = arith.addf %154, %153 : vector<2x32xf32>
    %156 = arith.divf %154, %155 : vector<2x32xf32>
    %157 = vector.extract_strided_slice %156 {offsets = [0, 0], sizes = [2, 16], strides = [1, 1]} : vector<2x32xf32> to vector<2x16xf32>
    %158 = vector.extract_strided_slice %156 {offsets = [0, 16], sizes = [2, 16], strides = [1, 1]} : vector<2x32xf32> to vector<2x16xf32>
    %159 = vector.extract_strided_slice %145 {offsets = [0, 32], sizes = [2, 16], strides = [1, 1]} : vector<2x48xf32> to vector<2x16xf32>
    %160 = vector.extract_strided_slice %148 {offsets = [0, 32], sizes = [2, 16], strides = [1, 1]} : vector<2x48xf32> to vector<2x16xf32>
    %161 = arith.mulf %157, %160 : vector<2x16xf32>
    %162 = arith.addf %159, %161 : vector<2x16xf32>
    %163 = math.tanh %162 : vector<2x16xf32>
    %cst_32 = arith.constant 1.000000e+00 : f32
    %164 = vector.broadcast %cst_32 : f32 to vector<2x16xf32>
    %165 = arith.subf %164, %158 : vector<2x16xf32>
    %166 = arith.mulf %165, %163 : vector<2x16xf32>
    %167 = arith.mulf %158, %140 : vector<2x16xf32>
    %168 = arith.addf %166, %167 : vector<2x16xf32>
    %169 = vector.extract_strided_slice %28 {offsets = [0, 0], sizes = [2, 48], strides = [1, 1]} : vector<2x96xf32> to vector<2x48xf32>
    %170 = vector.extract_strided_slice %23 {offsets = [0, 48], sizes = [2, 48], strides = [1, 1]} : vector<2x96xf32> to vector<2x48xf32>
    %171 = arith.addf %169, %170 : vector<2x48xf32>
    %172 = vector.broadcast %29 : vector<1x48xf32> to vector<2x48xf32>
    %173 = arith.addf %171, %172 : vector<2x48xf32>
    %cst_33 = arith.constant dense<0.000000e+00> : vector<2x48xf32>
    %174 = tpu.matmul %168, %30, %cst_33 {dimension_numbers = #tpu.dot_dimension_numbers<[1], [0], [0], [1], [0, 0, 1, 1], [], []>} : vector<2x16xf32>, vector<16x48xf32>, vector<2x48xf32> -> vector<2x48xf32>
    %175 = vector.broadcast %31 : vector<1x48xf32> to vector<2x48xf32>
    %176 = arith.addf %174, %175 : vector<2x48xf32>
    %177 = vector.extract_strided_slice %173 {offsets = [0, 0], sizes = [2, 32], strides = [1, 1]} : vector<2x48xf32> to vector<2x32xf32>
    %178 = vector.extract_strided_slice %176 {offsets = [0, 0], sizes = [2, 32], strides = [1, 1]} : vector<2x48xf32> to vector<2x32xf32>
    %179 = arith.addf %177, %178 : vector<2x32xf32>
    %180 = arith.negf %179 : vector<2x32xf32>
    %181 = math.exp %180 : vector<2x32xf32>
    %cst_34 = arith.constant 1.000000e+00 : f32
    %182 = vector.broadcast %cst_34 : f32 to vector<2x32xf32>
    %183 = arith.addf %182, %181 : vector<2x32xf32>
    %184 = arith.divf %182, %183 : vector<2x32xf32>
    %185 = vector.extract_strided_slice %184 {offsets = [0, 0], sizes = [2, 16], strides = [1, 1]} : vector<2x32xf32> to vector<2x16xf32>
    %186 = vector.extract_strided_slice %184 {offsets = [0, 16], sizes = [2, 16], strides = [1, 1]} : vector<2x32xf32> to vector<2x16xf32>
    %187 = vector.extract_strided_slice %173 {offsets = [0, 32], sizes = [2, 16], strides = [1, 1]} : vector<2x48xf32> to vector<2x16xf32>
    %188 = vector.extract_strided_slice %176 {offsets = [0, 32], sizes = [2, 16], strides = [1, 1]} : vector<2x48xf32> to vector<2x16xf32>
    %189 = arith.mulf %185, %188 : vector<2x16xf32>
    %190 = arith.addf %187, %189 : vector<2x16xf32>
    %191 = math.tanh %190 : vector<2x16xf32>
    %cst_35 = arith.constant 1.000000e+00 : f32
    %192 = vector.broadcast %cst_35 : f32 to vector<2x16xf32>
    %193 = arith.subf %192, %186 : vector<2x16xf32>
    %194 = arith.mulf %193, %191 : vector<2x16xf32>
    %195 = arith.mulf %186, %168 : vector<2x16xf32>
    %196 = arith.addf %194, %195 : vector<2x16xf32>
    %197 = tpu.concatenate %56, %84, %112, %140, %168, %196 in 0 : vector<2x16xf32>, vector<2x16xf32>, vector<2x16xf32>, vector<2x16xf32>, vector<2x16xf32>, vector<2x16xf32> -> vector<12x16xf32>
    %c160 = arith.constant 160 : index
    %c0_36 = arith.constant 0 : index
    %198 = vector.load %arg0[%c160, %c0_36] : memref<792x96xf32, #tpu.memory_space<vmem>>, vector<16x96xf32>
    %199 = vector.extract_strided_slice %197 {offsets = [0, 0], sizes = [12, 8], strides = [1, 1]} : vector<12x16xf32> to vector<12x8xf32>
    %200 = vector.extract_strided_slice %198 {offsets = [0, 0], sizes = [8, 96], strides = [1, 1]} : vector<16x96xf32> to vector<8x96xf32>
    %cst_37 = arith.constant dense<0.000000e+00> : vector<12x96xf32>
    %201 = tpu.matmul %199, %200, %cst_37 {dimension_numbers = #tpu.dot_dimension_numbers<[1], [0], [0], [1], [0, 0, 1, 1], [], []>} : vector<12x8xf32>, vector<8x96xf32>, vector<12x96xf32> -> vector<12x96xf32>
    %202 = vector.extract_strided_slice %197 {offsets = [0, 8], sizes = [12, 8], strides = [1, 1]} : vector<12x16xf32> to vector<12x8xf32>
    %203 = vector.extract_strided_slice %198 {offsets = [8, 0], sizes = [8, 96], strides = [1, 1]} : vector<16x96xf32> to vector<8x96xf32>
    %cst_38 = arith.constant dense<0.000000e+00> : vector<12x96xf32>
    %204 = tpu.matmul %202, %203, %cst_38 {dimension_numbers = #tpu.dot_dimension_numbers<[1], [0], [0], [1], [0, 0, 1, 1], [], []>} : vector<12x8xf32>, vector<8x96xf32>, vector<12x96xf32> -> vector<12x96xf32>
    %205 = vector.extract_strided_slice %201 {offsets = [0, 0], sizes = [2, 96], strides = [1, 1]} : vector<12x96xf32> to vector<2x96xf32>
    %206 = vector.extract_strided_slice %204 {offsets = [10, 0], sizes = [2, 96], strides = [1, 1]} : vector<12x96xf32> to vector<2x96xf32>
    %207 = arith.addf %205, %206 : vector<2x96xf32>
    %208 = vector.extract_strided_slice %201 {offsets = [2, 0], sizes = [2, 96], strides = [1, 1]} : vector<12x96xf32> to vector<2x96xf32>
    %209 = vector.extract_strided_slice %204 {offsets = [8, 0], sizes = [2, 96], strides = [1, 1]} : vector<12x96xf32> to vector<2x96xf32>
    %210 = arith.addf %208, %209 : vector<2x96xf32>
    %211 = vector.extract_strided_slice %201 {offsets = [4, 0], sizes = [2, 96], strides = [1, 1]} : vector<12x96xf32> to vector<2x96xf32>
    %212 = vector.extract_strided_slice %204 {offsets = [6, 0], sizes = [2, 96], strides = [1, 1]} : vector<12x96xf32> to vector<2x96xf32>
    %213 = arith.addf %211, %212 : vector<2x96xf32>
    %214 = vector.extract_strided_slice %201 {offsets = [6, 0], sizes = [2, 96], strides = [1, 1]} : vector<12x96xf32> to vector<2x96xf32>
    %215 = vector.extract_strided_slice %204 {offsets = [4, 0], sizes = [2, 96], strides = [1, 1]} : vector<12x96xf32> to vector<2x96xf32>
    %216 = arith.addf %214, %215 : vector<2x96xf32>
    %217 = vector.extract_strided_slice %201 {offsets = [8, 0], sizes = [2, 96], strides = [1, 1]} : vector<12x96xf32> to vector<2x96xf32>
    %218 = vector.extract_strided_slice %204 {offsets = [2, 0], sizes = [2, 96], strides = [1, 1]} : vector<12x96xf32> to vector<2x96xf32>
    %219 = arith.addf %217, %218 : vector<2x96xf32>
    %220 = vector.extract_strided_slice %201 {offsets = [10, 0], sizes = [2, 96], strides = [1, 1]} : vector<12x96xf32> to vector<2x96xf32>
    %221 = vector.extract_strided_slice %204 {offsets = [0, 0], sizes = [2, 96], strides = [1, 1]} : vector<12x96xf32> to vector<2x96xf32>
    %222 = arith.addf %220, %221 : vector<2x96xf32>
    %c176 = arith.constant 176 : index
    %c0_39 = arith.constant 0 : index
    %223 = vector.load %arg0[%c176, %c0_39] : memref<792x96xf32, #tpu.memory_space<vmem>>, vector<1x48xf32>
    %c184 = arith.constant 184 : index
    %c0_40 = arith.constant 0 : index
    %224 = vector.load %arg0[%c184, %c0_40] : memref<792x96xf32, #tpu.memory_space<vmem>>, vector<16x48xf32>
    %c200 = arith.constant 200 : index
    %c0_41 = arith.constant 0 : index
    %225 = vector.load %arg0[%c200, %c0_41] : memref<792x96xf32, #tpu.memory_space<vmem>>, vector<1x48xf32>
    %226 = vector.extract_strided_slice %207 {offsets = [0, 0], sizes = [2, 48], strides = [1, 1]} : vector<2x96xf32> to vector<2x48xf32>
    %227 = vector.extract_strided_slice %222 {offsets = [0, 48], sizes = [2, 48], strides = [1, 1]} : vector<2x96xf32> to vector<2x48xf32>
    %228 = arith.addf %226, %227 : vector<2x48xf32>
    %229 = vector.broadcast %223 : vector<1x48xf32> to vector<2x48xf32>
    %230 = arith.addf %228, %229 : vector<2x48xf32>
    %231 = vector.shape_cast %225 : vector<1x48xf32> to vector<1x48xf32>
    %232 = vector.broadcast %231 : vector<1x48xf32> to vector<2x48xf32>
    %233 = vector.extract_strided_slice %230 {offsets = [0, 0], sizes = [2, 32], strides = [1, 1]} : vector<2x48xf32> to vector<2x32xf32>
    %234 = vector.extract_strided_slice %232 {offsets = [0, 0], sizes = [2, 32], strides = [1, 1]} : vector<2x48xf32> to vector<2x32xf32>
    %235 = arith.addf %233, %234 : vector<2x32xf32>
    %236 = arith.negf %235 : vector<2x32xf32>
    %237 = math.exp %236 : vector<2x32xf32>
    %cst_42 = arith.constant 1.000000e+00 : f32
    %238 = vector.broadcast %cst_42 : f32 to vector<2x32xf32>
    %239 = arith.addf %238, %237 : vector<2x32xf32>
    %240 = arith.divf %238, %239 : vector<2x32xf32>
    %241 = vector.extract_strided_slice %240 {offsets = [0, 0], sizes = [2, 16], strides = [1, 1]} : vector<2x32xf32> to vector<2x16xf32>
    %242 = vector.extract_strided_slice %240 {offsets = [0, 16], sizes = [2, 16], strides = [1, 1]} : vector<2x32xf32> to vector<2x16xf32>
    %243 = vector.extract_strided_slice %230 {offsets = [0, 32], sizes = [2, 16], strides = [1, 1]} : vector<2x48xf32> to vector<2x16xf32>
    %244 = vector.extract_strided_slice %232 {offsets = [0, 32], sizes = [2, 16], strides = [1, 1]} : vector<2x48xf32> to vector<2x16xf32>
    %245 = arith.mulf %241, %244 : vector<2x16xf32>
    %246 = arith.addf %243, %245 : vector<2x16xf32>
    %247 = math.tanh %246 : vector<2x16xf32>
    %cst_43 = arith.constant 1.000000e+00 : f32
    %248 = vector.broadcast %cst_43 : f32 to vector<2x16xf32>
    %249 = arith.subf %248, %242 : vector<2x16xf32>
    %250 = arith.mulf %249, %247 : vector<2x16xf32>
    %251 = vector.extract_strided_slice %210 {offsets = [0, 0], sizes = [2, 48], strides = [1, 1]} : vector<2x96xf32> to vector<2x48xf32>
    %252 = vector.extract_strided_slice %219 {offsets = [0, 48], sizes = [2, 48], strides = [1, 1]} : vector<2x96xf32> to vector<2x48xf32>
    %253 = arith.addf %251, %252 : vector<2x48xf32>
    %254 = vector.broadcast %223 : vector<1x48xf32> to vector<2x48xf32>
    %255 = arith.addf %253, %254 : vector<2x48xf32>
    %cst_44 = arith.constant dense<0.000000e+00> : vector<2x48xf32>
    %256 = tpu.matmul %250, %224, %cst_44 {dimension_numbers = #tpu.dot_dimension_numbers<[1], [0], [0], [1], [0, 0, 1, 1], [], []>} : vector<2x16xf32>, vector<16x48xf32>, vector<2x48xf32> -> vector<2x48xf32>
    %257 = vector.broadcast %225 : vector<1x48xf32> to vector<2x48xf32>
    %258 = arith.addf %256, %257 : vector<2x48xf32>
    %259 = vector.extract_strided_slice %255 {offsets = [0, 0], sizes = [2, 32], strides = [1, 1]} : vector<2x48xf32> to vector<2x32xf32>
    %260 = vector.extract_strided_slice %258 {offsets = [0, 0], sizes = [2, 32], strides = [1, 1]} : vector<2x48xf32> to vector<2x32xf32>
    %261 = arith.addf %259, %260 : vector<2x32xf32>
    %262 = arith.negf %261 : vector<2x32xf32>
    %263 = math.exp %262 : vector<2x32xf32>
    %cst_45 = arith.constant 1.000000e+00 : f32
    %264 = vector.broadcast %cst_45 : f32 to vector<2x32xf32>
    %265 = arith.addf %264, %263 : vector<2x32xf32>
    %266 = arith.divf %264, %265 : vector<2x32xf32>
    %267 = vector.extract_strided_slice %266 {offsets = [0, 0], sizes = [2, 16], strides = [1, 1]} : vector<2x32xf32> to vector<2x16xf32>
    %268 = vector.extract_strided_slice %266 {offsets = [0, 16], sizes = [2, 16], strides = [1, 1]} : vector<2x32xf32> to vector<2x16xf32>
    %269 = vector.extract_strided_slice %255 {offsets = [0, 32], sizes = [2, 16], strides = [1, 1]} : vector<2x48xf32> to vector<2x16xf32>
    %270 = vector.extract_strided_slice %258 {offsets = [0, 32], sizes = [2, 16], strides = [1, 1]} : vector<2x48xf32> to vector<2x16xf32>
    %271 = arith.mulf %267, %270 : vector<2x16xf32>
    %272 = arith.addf %269, %271 : vector<2x16xf32>
    %273 = math.tanh %272 : vector<2x16xf32>
    %cst_46 = arith.constant 1.000000e+00 : f32
    %274 = vector.broadcast %cst_46 : f32 to vector<2x16xf32>
    %275 = arith.subf %274, %268 : vector<2x16xf32>
    %276 = arith.mulf %275, %273 : vector<2x16xf32>
    %277 = arith.mulf %268, %250 : vector<2x16xf32>
    %278 = arith.addf %276, %277 : vector<2x16xf32>
    %279 = vector.extract_strided_slice %213 {offsets = [0, 0], sizes = [2, 48], strides = [1, 1]} : vector<2x96xf32> to vector<2x48xf32>
    %280 = vector.extract_strided_slice %216 {offsets = [0, 48], sizes = [2, 48], strides = [1, 1]} : vector<2x96xf32> to vector<2x48xf32>
    %281 = arith.addf %279, %280 : vector<2x48xf32>
    %282 = vector.broadcast %223 : vector<1x48xf32> to vector<2x48xf32>
    %283 = arith.addf %281, %282 : vector<2x48xf32>
    %cst_47 = arith.constant dense<0.000000e+00> : vector<2x48xf32>
    %284 = tpu.matmul %278, %224, %cst_47 {dimension_numbers = #tpu.dot_dimension_numbers<[1], [0], [0], [1], [0, 0, 1, 1], [], []>} : vector<2x16xf32>, vector<16x48xf32>, vector<2x48xf32> -> vector<2x48xf32>
    %285 = vector.broadcast %225 : vector<1x48xf32> to vector<2x48xf32>
    %286 = arith.addf %284, %285 : vector<2x48xf32>
    %287 = vector.extract_strided_slice %283 {offsets = [0, 0], sizes = [2, 32], strides = [1, 1]} : vector<2x48xf32> to vector<2x32xf32>
    %288 = vector.extract_strided_slice %286 {offsets = [0, 0], sizes = [2, 32], strides = [1, 1]} : vector<2x48xf32> to vector<2x32xf32>
    %289 = arith.addf %287, %288 : vector<2x32xf32>
    %290 = arith.negf %289 : vector<2x32xf32>
    %291 = math.exp %290 : vector<2x32xf32>
    %cst_48 = arith.constant 1.000000e+00 : f32
    %292 = vector.broadcast %cst_48 : f32 to vector<2x32xf32>
    %293 = arith.addf %292, %291 : vector<2x32xf32>
    %294 = arith.divf %292, %293 : vector<2x32xf32>
    %295 = vector.extract_strided_slice %294 {offsets = [0, 0], sizes = [2, 16], strides = [1, 1]} : vector<2x32xf32> to vector<2x16xf32>
    %296 = vector.extract_strided_slice %294 {offsets = [0, 16], sizes = [2, 16], strides = [1, 1]} : vector<2x32xf32> to vector<2x16xf32>
    %297 = vector.extract_strided_slice %283 {offsets = [0, 32], sizes = [2, 16], strides = [1, 1]} : vector<2x48xf32> to vector<2x16xf32>
    %298 = vector.extract_strided_slice %286 {offsets = [0, 32], sizes = [2, 16], strides = [1, 1]} : vector<2x48xf32> to vector<2x16xf32>
    %299 = arith.mulf %295, %298 : vector<2x16xf32>
    %300 = arith.addf %297, %299 : vector<2x16xf32>
    %301 = math.tanh %300 : vector<2x16xf32>
    %cst_49 = arith.constant 1.000000e+00 : f32
    %302 = vector.broadcast %cst_49 : f32 to vector<2x16xf32>
    %303 = arith.subf %302, %296 : vector<2x16xf32>
    %304 = arith.mulf %303, %301 : vector<2x16xf32>
    %305 = arith.mulf %296, %278 : vector<2x16xf32>
    %306 = arith.addf %304, %305 : vector<2x16xf32>
    %307 = vector.extract_strided_slice %216 {offsets = [0, 0], sizes = [2, 48], strides = [1, 1]} : vector<2x96xf32> to vector<2x48xf32>
    %308 = vector.extract_strided_slice %213 {offsets = [0, 48], sizes = [2, 48], strides = [1, 1]} : vector<2x96xf32> to vector<2x48xf32>
    %309 = arith.addf %307, %308 : vector<2x48xf32>
    %310 = vector.broadcast %223 : vector<1x48xf32> to vector<2x48xf32>
    %311 = arith.addf %309, %310 : vector<2x48xf32>
    %cst_50 = arith.constant dense<0.000000e+00> : vector<2x48xf32>
    %312 = tpu.matmul %306, %224, %cst_50 {dimension_numbers = #tpu.dot_dimension_numbers<[1], [0], [0], [1], [0, 0, 1, 1], [], []>} : vector<2x16xf32>, vector<16x48xf32>, vector<2x48xf32> -> vector<2x48xf32>
    %313 = vector.broadcast %225 : vector<1x48xf32> to vector<2x48xf32>
    %314 = arith.addf %312, %313 : vector<2x48xf32>
    %315 = vector.extract_strided_slice %311 {offsets = [0, 0], sizes = [2, 32], strides = [1, 1]} : vector<2x48xf32> to vector<2x32xf32>
    %316 = vector.extract_strided_slice %314 {offsets = [0, 0], sizes = [2, 32], strides = [1, 1]} : vector<2x48xf32> to vector<2x32xf32>
    %317 = arith.addf %315, %316 : vector<2x32xf32>
    %318 = arith.negf %317 : vector<2x32xf32>
    %319 = math.exp %318 : vector<2x32xf32>
    %cst_51 = arith.constant 1.000000e+00 : f32
    %320 = vector.broadcast %cst_51 : f32 to vector<2x32xf32>
    %321 = arith.addf %320, %319 : vector<2x32xf32>
    %322 = arith.divf %320, %321 : vector<2x32xf32>
    %323 = vector.extract_strided_slice %322 {offsets = [0, 0], sizes = [2, 16], strides = [1, 1]} : vector<2x32xf32> to vector<2x16xf32>
    %324 = vector.extract_strided_slice %322 {offsets = [0, 16], sizes = [2, 16], strides = [1, 1]} : vector<2x32xf32> to vector<2x16xf32>
    %325 = vector.extract_strided_slice %311 {offsets = [0, 32], sizes = [2, 16], strides = [1, 1]} : vector<2x48xf32> to vector<2x16xf32>
    %326 = vector.extract_strided_slice %314 {offsets = [0, 32], sizes = [2, 16], strides = [1, 1]} : vector<2x48xf32> to vector<2x16xf32>
    %327 = arith.mulf %323, %326 : vector<2x16xf32>
    %328 = arith.addf %325, %327 : vector<2x16xf32>
    %329 = math.tanh %328 : vector<2x16xf32>
    %cst_52 = arith.constant 1.000000e+00 : f32
    %330 = vector.broadcast %cst_52 : f32 to vector<2x16xf32>
    %331 = arith.subf %330, %324 : vector<2x16xf32>
    %332 = arith.mulf %331, %329 : vector<2x16xf32>
    %333 = arith.mulf %324, %306 : vector<2x16xf32>
    %334 = arith.addf %332, %333 : vector<2x16xf32>
    %335 = vector.extract_strided_slice %219 {offsets = [0, 0], sizes = [2, 48], strides = [1, 1]} : vector<2x96xf32> to vector<2x48xf32>
    %336 = vector.extract_strided_slice %210 {offsets = [0, 48], sizes = [2, 48], strides = [1, 1]} : vector<2x96xf32> to vector<2x48xf32>
    %337 = arith.addf %335, %336 : vector<2x48xf32>
    %338 = vector.broadcast %223 : vector<1x48xf32> to vector<2x48xf32>
    %339 = arith.addf %337, %338 : vector<2x48xf32>
    %cst_53 = arith.constant dense<0.000000e+00> : vector<2x48xf32>
    %340 = tpu.matmul %334, %224, %cst_53 {dimension_numbers = #tpu.dot_dimension_numbers<[1], [0], [0], [1], [0, 0, 1, 1], [], []>} : vector<2x16xf32>, vector<16x48xf32>, vector<2x48xf32> -> vector<2x48xf32>
    %341 = vector.broadcast %225 : vector<1x48xf32> to vector<2x48xf32>
    %342 = arith.addf %340, %341 : vector<2x48xf32>
    %343 = vector.extract_strided_slice %339 {offsets = [0, 0], sizes = [2, 32], strides = [1, 1]} : vector<2x48xf32> to vector<2x32xf32>
    %344 = vector.extract_strided_slice %342 {offsets = [0, 0], sizes = [2, 32], strides = [1, 1]} : vector<2x48xf32> to vector<2x32xf32>
    %345 = arith.addf %343, %344 : vector<2x32xf32>
    %346 = arith.negf %345 : vector<2x32xf32>
    %347 = math.exp %346 : vector<2x32xf32>
    %cst_54 = arith.constant 1.000000e+00 : f32
    %348 = vector.broadcast %cst_54 : f32 to vector<2x32xf32>
    %349 = arith.addf %348, %347 : vector<2x32xf32>
    %350 = arith.divf %348, %349 : vector<2x32xf32>
    %351 = vector.extract_strided_slice %350 {offsets = [0, 0], sizes = [2, 16], strides = [1, 1]} : vector<2x32xf32> to vector<2x16xf32>
    %352 = vector.extract_strided_slice %350 {offsets = [0, 16], sizes = [2, 16], strides = [1, 1]} : vector<2x32xf32> to vector<2x16xf32>
    %353 = vector.extract_strided_slice %339 {offsets = [0, 32], sizes = [2, 16], strides = [1, 1]} : vector<2x48xf32> to vector<2x16xf32>
    %354 = vector.extract_strided_slice %342 {offsets = [0, 32], sizes = [2, 16], strides = [1, 1]} : vector<2x48xf32> to vector<2x16xf32>
    %355 = arith.mulf %351, %354 : vector<2x16xf32>
    %356 = arith.addf %353, %355 : vector<2x16xf32>
    %357 = math.tanh %356 : vector<2x16xf32>
    %cst_55 = arith.constant 1.000000e+00 : f32
    %358 = vector.broadcast %cst_55 : f32 to vector<2x16xf32>
    %359 = arith.subf %358, %352 : vector<2x16xf32>
    %360 = arith.mulf %359, %357 : vector<2x16xf32>
    %361 = arith.mulf %352, %334 : vector<2x16xf32>
    %362 = arith.addf %360, %361 : vector<2x16xf32>
    %363 = vector.extract_strided_slice %222 {offsets = [0, 0], sizes = [2, 48], strides = [1, 1]} : vector<2x96xf32> to vector<2x48xf32>
    %364 = vector.extract_strided_slice %207 {offsets = [0, 48], sizes = [2, 48], strides = [1, 1]} : vector<2x96xf32> to vector<2x48xf32>
    %365 = arith.addf %363, %364 : vector<2x48xf32>
    %366 = vector.broadcast %223 : vector<1x48xf32> to vector<2x48xf32>
    %367 = arith.addf %365, %366 : vector<2x48xf32>
    %cst_56 = arith.constant dense<0.000000e+00> : vector<2x48xf32>
    %368 = tpu.matmul %362, %224, %cst_56 {dimension_numbers = #tpu.dot_dimension_numbers<[1], [0], [0], [1], [0, 0, 1, 1], [], []>} : vector<2x16xf32>, vector<16x48xf32>, vector<2x48xf32> -> vector<2x48xf32>
    %369 = vector.broadcast %225 : vector<1x48xf32> to vector<2x48xf32>
    %370 = arith.addf %368, %369 : vector<2x48xf32>
    %371 = vector.extract_strided_slice %367 {offsets = [0, 0], sizes = [2, 32], strides = [1, 1]} : vector<2x48xf32> to vector<2x32xf32>
    %372 = vector.extract_strided_slice %370 {offsets = [0, 0], sizes = [2, 32], strides = [1, 1]} : vector<2x48xf32> to vector<2x32xf32>
    %373 = arith.addf %371, %372 : vector<2x32xf32>
    %374 = arith.negf %373 : vector<2x32xf32>
    %375 = math.exp %374 : vector<2x32xf32>
    %cst_57 = arith.constant 1.000000e+00 : f32
    %376 = vector.broadcast %cst_57 : f32 to vector<2x32xf32>
    %377 = arith.addf %376, %375 : vector<2x32xf32>
    %378 = arith.divf %376, %377 : vector<2x32xf32>
    %379 = vector.extract_strided_slice %378 {offsets = [0, 0], sizes = [2, 16], strides = [1, 1]} : vector<2x32xf32> to vector<2x16xf32>
    %380 = vector.extract_strided_slice %378 {offsets = [0, 16], sizes = [2, 16], strides = [1, 1]} : vector<2x32xf32> to vector<2x16xf32>
    %381 = vector.extract_strided_slice %367 {offsets = [0, 32], sizes = [2, 16], strides = [1, 1]} : vector<2x48xf32> to vector<2x16xf32>
    %382 = vector.extract_strided_slice %370 {offsets = [0, 32], sizes = [2, 16], strides = [1, 1]} : vector<2x48xf32> to vector<2x16xf32>
    %383 = arith.mulf %379, %382 : vector<2x16xf32>
    %384 = arith.addf %381, %383 : vector<2x16xf32>
    %385 = math.tanh %384 : vector<2x16xf32>
    %cst_58 = arith.constant 1.000000e+00 : f32
    %386 = vector.broadcast %cst_58 : f32 to vector<2x16xf32>
    %387 = arith.subf %386, %380 : vector<2x16xf32>
    %388 = arith.mulf %387, %385 : vector<2x16xf32>
    %389 = arith.mulf %380, %362 : vector<2x16xf32>
    %390 = arith.addf %388, %389 : vector<2x16xf32>
    %c208 = arith.constant 208 : index
    %c0_59 = arith.constant 0 : index
    %391 = vector.load %arg0[%c208, %c0_59] : memref<792x96xf32, #tpu.memory_space<vmem>>, vector<32x32xf32>
    %c240 = arith.constant 240 : index
    %c0_60 = arith.constant 0 : index
    %392 = vector.load %arg0[%c240, %c0_60] : memref<792x96xf32, #tpu.memory_space<vmem>>, vector<1x32xf32>
    %393 = vector.extract_strided_slice %391 {offsets = [0, 0], sizes = [16, 32], strides = [1, 1]} : vector<32x32xf32> to vector<16x32xf32>
    %cst_61 = arith.constant dense<0.000000e+00> : vector<2x32xf32>
    %394 = tpu.matmul %196, %393, %cst_61 {dimension_numbers = #tpu.dot_dimension_numbers<[1], [0], [0], [1], [0, 0, 1, 1], [], []>} : vector<2x16xf32>, vector<16x32xf32>, vector<2x32xf32> -> vector<2x32xf32>
    %395 = vector.broadcast %392 : vector<1x32xf32> to vector<2x32xf32>
    %396 = arith.addf %395, %394 : vector<2x32xf32>
    %397 = vector.extract_strided_slice %391 {offsets = [16, 0], sizes = [16, 32], strides = [1, 1]} : vector<32x32xf32> to vector<16x32xf32>
    %cst_62 = arith.constant dense<0.000000e+00> : vector<2x32xf32>
    %398 = tpu.matmul %390, %397, %cst_62 {dimension_numbers = #tpu.dot_dimension_numbers<[1], [0], [0], [1], [0, 0, 1, 1], [], []>} : vector<2x16xf32>, vector<16x32xf32>, vector<2x32xf32> -> vector<2x32xf32>
    %399 = arith.addf %396, %398 : vector<2x32xf32>
    %cst_63 = arith.constant 0.000000e+00 : f32
    %400 = vector.broadcast %cst_63 : f32 to vector<2x32xf32>
    %401 = arith.maximumf %399, %400 : vector<2x32xf32>
    %c344 = arith.constant 344 : index
    %c0_64 = arith.constant 0 : index
    %402 = vector.load %arg0[%c344, %c0_64] : memref<792x96xf32, #tpu.memory_space<vmem>>, vector<32x96xf32>
    %cst_65 = arith.constant dense<0.000000e+00> : vector<2x96xf32>
    %403 = tpu.matmul %401, %402, %cst_65 {dimension_numbers = #tpu.dot_dimension_numbers<[1], [0], [0], [1], [0, 0, 1, 1], [], []>} : vector<2x32xf32>, vector<32x96xf32>, vector<2x96xf32> -> vector<2x96xf32>
    %404 = arith.addf %19, %403 : vector<2x96xf32>
    %cst_66 = arith.constant 0.000000e+00 : f32
    %405 = vector.broadcast %cst_66 : f32 to vector<2x96xf32>
    %406 = arith.maximumf %404, %405 : vector<2x96xf32>
    %c384 = arith.constant 384 : index
    %c0_67 = arith.constant 0 : index
    %407 = vector.load %arg0[%c384, %c0_67] : memref<792x96xf32, #tpu.memory_space<vmem>>, vector<96x96xf32>
    %cst_68 = arith.constant dense<0.000000e+00> : vector<2x96xf32>
    %408 = tpu.matmul %406, %407, %cst_68 {dimension_numbers = #tpu.dot_dimension_numbers<[1], [0], [0], [1], [0, 0, 1, 1], [], []>} : vector<2x96xf32>, vector<96x96xf32>, vector<2x96xf32> -> vector<2x96xf32>
    %c576 = arith.constant 576 : index
    %c0_69 = arith.constant 0 : index
    %409 = vector.load %arg0[%c576, %c0_69] : memref<792x96xf32, #tpu.memory_space<vmem>>, vector<1x96xf32>
    %410 = vector.broadcast %409 : vector<1x96xf32> to vector<2x96xf32>
    %411 = arith.addf %408, %410 : vector<2x96xf32>
    %cst_70 = arith.constant 0.000000e+00 : f32
    %412 = vector.broadcast %cst_70 : f32 to vector<2x96xf32>
    %413 = arith.maximumf %411, %412 : vector<2x96xf32>
    %c480 = arith.constant 480 : index
    %c0_71 = arith.constant 0 : index
    %414 = vector.load %arg0[%c480, %c0_71] : memref<792x96xf32, #tpu.memory_space<vmem>>, vector<96x96xf32>
    %cst_72 = arith.constant dense<0.000000e+00> : vector<2x96xf32>
    %415 = tpu.matmul %406, %414, %cst_72 {dimension_numbers = #tpu.dot_dimension_numbers<[1], [0], [0], [1], [0, 0, 1, 1], [], []>} : vector<2x96xf32>, vector<96x96xf32>, vector<2x96xf32> -> vector<2x96xf32>
    %c584 = arith.constant 584 : index
    %c0_73 = arith.constant 0 : index
    %416 = vector.load %arg0[%c584, %c0_73] : memref<792x96xf32, #tpu.memory_space<vmem>>, vector<1x96xf32>
    %417 = vector.broadcast %416 : vector<1x96xf32> to vector<2x96xf32>
    %418 = arith.addf %415, %417 : vector<2x96xf32>
    %cst_74 = arith.constant 0.000000e+00 : f32
    %419 = vector.broadcast %cst_74 : f32 to vector<2x96xf32>
    %420 = arith.maximumf %418, %419 : vector<2x96xf32>
    %c592 = arith.constant 592 : index
    %c0_75 = arith.constant 0 : index
    %421 = vector.load %arg0[%c592, %c0_75] : memref<792x96xf32, #tpu.memory_space<vmem>>, vector<96x24xf32>
    %cst_76 = arith.constant dense<0.000000e+00> : vector<2x24xf32>
    %422 = tpu.matmul %413, %421, %cst_76 {dimension_numbers = #tpu.dot_dimension_numbers<[1], [0], [0], [1], [0, 0, 1, 1], [], []>} : vector<2x96xf32>, vector<96x24xf32>, vector<2x24xf32> -> vector<2x24xf32>
    %c688 = arith.constant 688 : index
    %c0_77 = arith.constant 0 : index
    %423 = vector.load %arg0[%c688, %c0_77] : memref<792x96xf32, #tpu.memory_space<vmem>>, vector<96x24xf32>
    %cst_78 = arith.constant dense<0.000000e+00> : vector<2x24xf32>
    %424 = tpu.matmul %420, %423, %cst_78 {dimension_numbers = #tpu.dot_dimension_numbers<[1], [0], [0], [1], [0, 0, 1, 1], [], []>} : vector<2x96xf32>, vector<96x24xf32>, vector<2x24xf32> -> vector<2x24xf32>
    %425 = arith.addf %422, %424 : vector<2x24xf32>
    %c784 = arith.constant 784 : index
    %c0_79 = arith.constant 0 : index
    %426 = vector.load %arg0[%c784, %c0_79] : memref<792x96xf32, #tpu.memory_space<vmem>>, vector<1x24xf32>
    %427 = vector.broadcast %426 : vector<1x24xf32> to vector<2x24xf32>
    %428 = arith.addf %425, %427 : vector<2x24xf32>
    %c0_80 = arith.constant 0 : index
    %c0_81 = arith.constant 0 : index
    %429 = vector.load %arg3[%c0_80, %c0_81] : memref<2x24xf32, #tpu.memory_space<vmem>>, vector<2x24xf32>
    tpu.vector_store %arg3[%c0_80, %c0_81], %428 {strides = array<i32>} : memref<2x24xf32, #tpu.memory_space<vmem>>, vector<2x24xf32>,
    return
  }
}

</mosaic_0001>

<llo_original>
// kernel: encoder_forward.1
$region0: #{encoder_forward.1}
  #allocation0 [shape = 'u32[]', space=smem, size = 0x4, offset = 0x4, fixed_abs, tag = 'smem constant byte address 0x4 - core index']
  #allocation1 [shape = 'u32[72,128]{1,0:T(1,128)}', space=vmem, size = 0x9000, scoped, tag = 'internal scratch']
  %s0 = inlined_call_operand.vmem [shape: f32[792,96], index: 0, kind: input, shape index: {}]
  %s1 = inlined_call_operand.vmem [shape: f32[2,7], index: 1, kind: input, shape index: {}]
  %s2 = inlined_call_operand.vmem [shape: f32[12,8], index: 2, kind: input, shape index: {}]
  %s3 = inlined_call_operand.hbm [shape: f32[2,24], index: 3, kind: output, shape index: {}]
  %s4 = sld [smem:[#allocation0]]
  $region22: #{encoder_forward.1} parent=0
    _
  %s6 = ssub.s32 1, %s4
  %s7 = scalar_select 0, %s6, %s4
  $region1: #{encoder_forward.1} parent=0
    #allocation2 [shape = 'u8[1024]{0}', space=vmem, size = 0x400, scoped, tag = 'output window, operand 0, single buffered']
    #allocation3 [shape = 's32[1]{0}', space=sflag, size = 0x4, scoped, tag = 'scoped memory for encoder_forward.1']
    %8 = vsyncpa [#allocation3], 0
    // Predicated region
    $region2: #{encoder_forward.1} parent=1 // pred_check
      _
    $region3: #{encoder_forward.1} parent=1 // pred_check_branch
      %10 = sbr.rel (0) target = $region5
    $region4: #{encoder_forward.1} parent=1 // pred_region
      _
    $region5: #{encoder_forward.1} parent=1 // pred_fallthru
      _
    // Predicated region
    $region6: #{encoder_forward.1} parent=1 // pred_check
      _
    $region7: #{encoder_forward.1} parent=1 // pred_check_branch
      %12 = sbr.rel (0) target = $region9
    $region8: #{encoder_forward.1} parent=1 // pred_region
      _
    $region9: #{encoder_forward.1} parent=1 // pred_fallthru
      _
    // Predicated region
    $region10: #{encoder_forward.1} parent=1 // pred_check
      _
    $region11: #{encoder_forward.1} parent=1 // pred_check_branch
      %14 = sbr.rel (0) target = $region13
    $region12: #{encoder_forward.1} parent=1 // pred_region
      _
    $region13: #{encoder_forward.1} parent=1 // pred_fallthru
      _
    %v15 = vld [vmem:[%s1] sm:$0x3]
    %v16 = vld [vmem:[%s0] sm:$0x7f]
    %v17 = vld [vmem:[%s0 + $0x8] sm:$0x1]
    %v18 = vperm.slane %v17, 0
    %vm19 = vcmask 56320
    %v21 = vsel %vm19, %v15, 0
    %vm23 = vcmask 1046528
    %v25 = vsel %vm23, %v16, 0
    %27 = vmatpush.msra.mxu0 0.0
    %28 = vmatpush.msra.mxu0 0.0
    %29 = vmatpush.msra.mxu0 0.0
    %30 = vmatpush.msra.mxu0 0.0
    %31 = vmatpush.msra.mxu0 0.0
    %32 = vmatpush.msra.mxu0 0.0
    %33 = vmatpush.msra.mxu0 0.0
    %34 = vmatpush.msra.mxu0 0.0
    %35 = vmatpush.msra.mxu0 0.0
    %36 = vmatpush.msra.mxu0 0.0
    %37 = vmatpush.msra.mxu0 0.0
    %38 = vmatpush.msra.mxu0 0.0
    %39 = vmatpush.msra.mxu0 0.0
    %40 = vmatpush.msra.mxu0 0.0
    %41 = vmatpush.msra.mxu0 0.0
    %42 = vmatpush.msra.mxu0 %v25
    %43 = vmatmul.f32.gmra.mxu0 %v21
    %v44 = vpop.f32.mrf.mxu0
    %v45 = vadd.f32 %v18, %v44
    %46 = vdwg.mxu0
    %v47 = vmax.f32 %v45, 0.0
    %v48 = vld [vmem:[%s0 + $0x10] sm:$0xff]
    %v49 = vld [vmem:[%s0 + $0x18] sm:$0xff]
    %v50 = vld [vmem:[%s0 + $0x20] sm:$0xff]
    %v51 = vld [vmem:[%s0 + $0x28] sm:$0xff]
    %v52 = vld [vmem:[%s0 + $0x30] sm:$0xff]
    %v53 = vld [vmem:[%s0 + $0x38] sm:$0xff]
    %v54 = vld [vmem:[%s0 + $0x40] sm:$0xff]
    %v55 = vld [vmem:[%s0 + $0x48] sm:$0xff]
    %v56 = vld [vmem:[%s0 + $0x50] sm:$0xff]
    %v57 = vld [vmem:[%s0 + $0x58] sm:$0xff]
    %v58 = vld [vmem:[%s0 + $0x60] sm:$0xff]
    %v59 = vld [vmem:[%s0 + $0x68] sm:$0xff]
    %v60 = vld [vmem:[%s0 + $0x70] sm:$0x1]
    %v61 = vperm.slane %v60, 0
    %vm62 = vcmask 785408
    %v64 = vsel %vm62, %v47, 0
    %66 = vmatpush.msra.mxu0 0.0
    %67 = vmatpush.msra.mxu0 0.0
    %68 = vmatpush.msra.mxu0 0.0
    %69 = vmatpush.msra.mxu0 0.0
    %70 = vmatpush.msra.mxu0 %v59
    %71 = vmatpush.msra.mxu0 %v58
    %72 = vmatpush.msra.mxu0 %v57
    %73 = vmatpush.msra.mxu0 %v56
    %74 = vmatpush.msra.mxu0 %v55
    %75 = vmatpush.msra.mxu0 %v54
    %76 = vmatpush.msra.mxu0 %v53
    %77 = vmatpush.msra.mxu0 %v52
    %78 = vmatpush.msra.mxu0 %v51
    %79 = vmatpush.msra.mxu0 %v50
    %80 = vmatpush.msra.mxu0 %v49
    %81 = vmatpush.msra.mxu0 %v48
    %82 = vmatmul.f32.gmra.mxu0 %v64
    %v83 = vpop.f32.mrf.mxu0
    %v84 = vadd.f32 %v61, %v83
    %85 = vdwg.mxu0
    %v86 = vmax.f32 %v84, 0.0
    %v87 = vld [vmem:[%s0 + $0xf8] sm:$0xff]
    %v88 = vld [vmem:[%s0 + $0x100] sm:$0xff]
    %v89 = vld [vmem:[%s0 + $0x108] sm:$0xff]
    %v90 = vld [vmem:[%s0 + $0x110] sm:$0xff]
    %v91 = vld [vmem:[%s0 + $0x118] sm:$0xff]
    %v92 = vld [vmem:[%s0 + $0x120] sm:$0xff]
    %v93 = vld [vmem:[%s0 + $0x128] sm:$0xff]
    %v94 = vld [vmem:[%s0 + $0x130] sm:$0xff]
    %v95 = vld [vmem:[%s0 + $0x138] sm:$0xff]
    %v96 = vld [vmem:[%s0 + $0x140] sm:$0xff]
    %v97 = vld [vmem:[%s0 + $0x148] sm:$0xff]
    %v98 = vld [vmem:[%s0 + $0x150] sm:$0xff]
    %v99 = vld [vmem:[%s0 + $0x178] sm:$0x1]
    %v100 = vperm.slane %v99, 0
    %v102 = vsel %vm62, %v86, 0
    %104 = vmatpush.msra.mxu0 0.0
    %105 = vmatpush.msra.mxu0 0.0
    %106 = vmatpush.msra.mxu0 0.0
    %107 = vmatpush.msra.mxu0 0.0
    %108 = vmatpush.msra.mxu0 %v98
    %109 = vmatpush.msra.mxu0 %v97
    %110 = vmatpush.msra.mxu0 %v96
    %111 = vmatpush.msra.mxu0 %v95
    %112 = vmatpush.msra.mxu0 %v94
    %113 = vmatpush.msra.mxu0 %v93
    %114 = vmatpush.msra.mxu0 %v92
    %115 = vmatpush.msra.mxu0 %v91
    %116 = vmatpush.msra.mxu0 %v90
    %117 = vmatpush.msra.mxu0 %v89
    %118 = vmatpush.msra.mxu0 %v88
    %119 = vmatpush.msra.mxu0 %v87
    %120 = vmatmul.f32.gmra.mxu0 %v102
    %v121 = vpop.f32.mrf.mxu0
    %v122 = vadd.f32 %v100, %v121
    %123 = vdwg.mxu0
    %v124 = vld [vmem:[%s2] sm:$0xff]
    %v125 = vld [vmem:[%s2 + $0x8] sm:$0xf]
    %v126 = vld [vmem:[%s0 + $0x78] sm:$0xff]
    %vm127 = vcmask 64512
    %v129 = vsel %vm127, %v124, 0
    %v132 = vsel %vm127, %v125, 0
    %134 = vmatpush.msra.mxu0 0.0
    %135 = vmatpush.msra.mxu0 0.0
    %136 = vmatpush.msra.mxu0 0.0
    %137 = vmatpush.msra.mxu0 0.0
    %138 = vmatpush.msra.mxu0 0.0
    %139 = vmatpush.msra.mxu0 0.0
    %140 = vmatpush.msra.mxu0 0.0
    %141 = vmatpush.msra.mxu0 0.0
    %142 = vmatpush.msra.mxu0 0.0
    %143 = vmatpush.msra.mxu0 0.0
    %144 = vmatpush.msra.mxu0 0.0
    %145 = vmatpush.msra.mxu0 0.0
    %146 = vmatpush.msra.mxu0 0.0
    %147 = vmatpush.msra.mxu0 0.0
    %148 = vmatpush.msra.mxu0 0.0
    %149 = vmatpush.msra.mxu0 %v126
    %150 = vmatmul.f32.gmra.mxu0 %v129
    %v151 = vpop.f32.mrf.mxu0
    %v152 = vadd.f32 0.0, %v151
    %153 = vmatmul.f32.gmra.mxu0 %v132
    %v154 = vpop.f32.mrf.mxu0
    %v155 = vadd.f32 0.0, %v154
    %156 = vdwg.mxu0
    %v157 = vld [vmem:[%s0 + $0x80] sm:$0x1]
    %v158 = vld [vmem:[%s0 + $0x88] sm:$0xff]
    %v159 = vld [vmem:[%s0 + $0x90] sm:$0xff]
    %v160 = vld [vmem:[%s0 + $0x98] sm:$0x1]
    %v162 = vrot.slane %v155, 2
    %163 = vrot.lane.b32.xlu0 %v162, 80
    %v164 = vpop.permute.xlu0 %163
    %v166 = vadd.f32 %v152, %v164
    %v167 = vperm.slane %v157, 0
    %v168 = vadd.f32 %v166, %v167
    %v169 = vperm.slane %v160, 0
    %v170 = vadd.f32 %v168, %v169
    %v171 = vxor.u32 %v170, 2147483648
    %v172 = vmul.f32 %v171, 1.442695
    %v173 = vpow.pop %v172
    %v174 = vadd.f32 %v173, 1.0
    %v175 = vrcp.pop %v174
    %v176 = vmul.f32 %v174, %v175
    %v177 = vsub.f32 1.0, %v176
    %v178 = vmul.f32 %v175, %v177
    %v179 = vadd.f32 %v175, %v178
    %vm180 = vweird.f32 %v174
    %vm181 = vweird.f32 %v175
    %vm182 = vmor %vm180, %vm181
    %v183 = vsel %vm182, %v175, %v179
    %v184 = vand.u32 2147483647, %v174
    %vm185 = vcmp.eq.f32.partialorder %v184, 8.507059e+37
    %v186 = vand.u32 %v174, 2147483648
    %v187 = vor.u32 1.1754944e-38, %v186
    %v188 = vsel %vm185, %v187, %v183
    %v189 = vmul.f32 1.0, %v188
    %191 = vrot.lane.b32.xlu0 %v169, 96
    %v192 = vpop.permute.xlu0 %191
    %v194 = vmul.f32 %v189, %v192
    %196 = vrot.lane.b32.xlu0 %v194, 32
    %v197 = vpop.permute.xlu0 %196
    %v199 = vadd.f32 %v168, %v197
    %v200 = vtanh.pop %v199
    %v201 = vsub.f32 1.0, %v189
    %203 = vrot.lane.b32.xlu0 %v200, 112
    %v204 = vpop.permute.xlu0 %203
    %v206 = vmul.f32 %v201, %v204
    %v207 = vrot.slane %v155, 6
    %208 = vrot.lane.b32.xlu0 %v207, 80
    %v209 = vpop.permute.xlu0 %208
    %v211 = vadd.f32 %v152, %v209
    %v212 = vadd.f32 %v211, %v167
    %214 = vrot.lane.b32.xlu0 %v206, 112
    %v215 = vpop.permute.xlu0 %214
    %vm216 = vcmask 130048
    %v217 = vsel %vm216, %v215, 0
    %219 = vmatpush.msra.mxu0 0.0
    %220 = vmatpush.msra.mxu0 0.0
    %221 = vmatpush.msra.mxu0 0.0
    %222 = vmatpush.msra.mxu0 0.0
    %223 = vmatpush.msra.mxu0 0.0
    %224 = vmatpush.msra.mxu0 0.0
    %225 = vmatpush.msra.mxu0 0.0
    %226 = vmatpush.msra.mxu0 0.0
    %227 = vmatpush.msra.mxu0 0.0
    %228 = vmatpush.msra.mxu0 0.0
    %229 = vmatpush.msra.mxu0 0.0
    %230 = vmatpush.msra.mxu0 0.0
    %231 = vmatpush.msra.mxu0 0.0
    %232 = vmatpush.msra.mxu0 0.0
    %233 = vmatpush.msra.mxu0 %v159
    %234 = vmatpush.msra.mxu0 %v158
    %235 = vmatmul.f32.gmra.mxu0 %v217
    %v236 = vpop.f32.mrf.mxu0
    %v237 = vadd.f32 %v169, %v236
    %238 = vdwg.mxu0
    %v240 = vrot.slane %v237, 6
    %v242 = vadd.f32 %v212, %v240
    %v243 = vxor.u32 %v242, 2147483648
    %v244 = vmul.f32 %v243, 1.442695
    %v245 = vpow.pop %v244
    %v246 = vadd.f32 %v245, 1.0
    %v247 = vrcp.pop %v246
    %v248 = vmul.f32 %v246, %v247
    %v249 = vsub.f32 1.0, %v248
    %v250 = vmul.f32 %v247, %v249
    %v251 = vadd.f32 %v247, %v250
    %vm252 = vweird.f32 %v246
    %vm253 = vweird.f32 %v247
    %vm254 = vmor %vm252, %vm253
    %v255 = vsel %vm254, %v247, %v251
    %v256 = vand.u32 2147483647, %v246
    %vm257 = vcmp.eq.f32.partialorder %v256, 8.507059e+37
    %v258 = vand.u32 %v246, 2147483648
    %v259 = vor.u32 1.1754944e-38, %v258
    %v260 = vsel %vm257, %v259, %v255
    %v261 = vmul.f32 1.0, %v260
    %262 = vrot.lane.b32.xlu0 %v240, 96
    %v263 = vpop.permute.xlu0 %262
    %v265 = vmul.f32 %v261, %v263
    %267 = vrot.lane.b32.xlu0 %v265, 32
    %v268 = vpop.permute.xlu0 %267
    %v270 = vadd.f32 %v212, %v268
    %v271 = vtanh.pop %v270
    %v272 = vsub.f32 1.0, %v261
    %274 = vrot.lane.b32.xlu0 %v271, 112
    %v275 = vpop.permute.xlu0 %274
    %v277 = vmul.f32 %v272, %v275
    %v278 = vrot.slane %v206, 6
    %v280 = vmul.f32 %v261, %v278
    %v281 = vadd.f32 %v277, %v280
    %v283 = vrot.slane %v152, 2
    %284 = vrot.lane.b32.xlu0 %v283, 80
    %v285 = vpop.permute.xlu0 %284
    %v287 = vadd.f32 %v152, %v285
    %v288 = vadd.f32 %v287, %v167
    %v290 = vrot.slane %v281, 2
    %291 = vrot.lane.b32.xlu0 %v290, 112
    %v292 = vpop.permute.xlu0 %291
    %v293 = vsel %vm216, %v292, 0
    %295 = vmatpush.msra.mxu0 0.0
    %296 = vmatpush.msra.mxu0 0.0
    %297 = vmatpush.msra.mxu0 0.0
    %298 = vmatpush.msra.mxu0 0.0
    %299 = vmatpush.msra.mxu0 0.0
    %300 = vmatpush.msra.mxu0 0.0
    %301 = vmatpush.msra.mxu0 0.0
    %302 = vmatpush.msra.mxu0 0.0
    %303 = vmatpush.msra.mxu0 0.0
    %304 = vmatpush.msra.mxu0 0.0
    %305 = vmatpush.msra.mxu0 0.0
    %306 = vmatpush.msra.mxu0 0.0
    %307 = vmatpush.msra.mxu0 0.0
    %308 = vmatpush.msra.mxu0 0.0
    %309 = vmatpush.msra.mxu0 %v159
    %310 = vmatpush.msra.mxu0 %v158
    %311 = vmatmul.f32.gmra.mxu0 %v293
    %v312 = vpop.f32.mrf.mxu0
    %v313 = vadd.f32 %v169, %v312
    %314 = vdwg.mxu0
    %v316 = vrot.slane %v313, 4
    %v318 = vadd.f32 %v288, %v316
    %v319 = vxor.u32 %v318, 2147483648
    %v320 = vmul.f32 %v319, 1.442695
    %v321 = vpow.pop %v320
    %v322 = vadd.f32 %v321, 1.0
    %v323 = vrcp.pop %v322
    %v324 = vmul.f32 %v322, %v323
    %v325 = vsub.f32 1.0, %v324
    %v326 = vmul.f32 %v323, %v325
    %v327 = vadd.f32 %v323, %v326
    %vm328 = vweird.f32 %v322
    %vm329 = vweird.f32 %v323
    %vm330 = vmor %vm328, %vm329
    %v331 = vsel %vm330, %v323, %v327
    %v332 = vand.u32 2147483647, %v322
    %vm333 = vcmp.eq.f32.partialorder %v332, 8.507059e+37
    %v334 = vand.u32 %v322, 2147483648
    %v335 = vor.u32 1.1754944e-38, %v334
    %v336 = vsel %vm333, %v335, %v331
    %v337 = vmul.f32 1.0, %v336
    %338 = vrot.lane.b32.xlu0 %v316, 96
    %v339 = vpop.permute.xlu0 %338
    %v341 = vmul.f32 %v337, %v339
    %343 = vrot.lane.b32.xlu0 %v341, 32
    %v344 = vpop.permute.xlu0 %343
    %v346 = vadd.f32 %v288, %v344
    %v347 = vtanh.pop %v346
    %v348 = vsub.f32 1.0, %v337
    %350 = vrot.lane.b32.xlu0 %v347, 112
    %v351 = vpop.permute.xlu0 %350
    %v353 = vmul.f32 %v348, %v351
    %v354 = vrot.slane %v281, 6
    %v356 = vmul.f32 %v337, %v354
    %v357 = vadd.f32 %v353, %v356
    %v358 = vrot.slane %v152, 6
    %359 = vrot.lane.b32.xlu0 %v358, 80
    %v360 = vpop.permute.xlu0 %359
    %v362 = vadd.f32 %v152, %v360
    %v363 = vadd.f32 %v362, %v167
    %v365 = vrot.slane %v357, 4
    %366 = vrot.lane.b32.xlu0 %v365, 112
    %v367 = vpop.permute.xlu0 %366
    %v368 = vsel %vm216, %v367, 0
    %370 = vmatpush.msra.mxu0 0.0
    %371 = vmatpush.msra.mxu0 0.0
    %372 = vmatpush.msra.mxu0 0.0
    %373 = vmatpush.msra.mxu0 0.0
    %374 = vmatpush.msra.mxu0 0.0
    %375 = vmatpush.msra.mxu0 0.0
    %376 = vmatpush.msra.mxu0 0.0
    %377 = vmatpush.msra.mxu0 0.0
    %378 = vmatpush.msra.mxu0 0.0
    %379 = vmatpush.msra.mxu0 0.0
    %380 = vmatpush.msra.mxu0 0.0
    %381 = vmatpush.msra.mxu0 0.0
    %382 = vmatpush.msra.mxu0 0.0
    %383 = vmatpush.msra.mxu0 0.0
    %384 = vmatpush.msra.mxu0 %v159
    %385 = vmatpush.msra.mxu0 %v158
    %386 = vmatmul.f32.gmra.mxu0 %v368
    %v387 = vpop.f32.mrf.mxu0
    %v388 = vadd.f32 %v169, %v387
    %389 = vdwg.mxu0
    %v391 = vrot.slane %v388, 2
    %v393 = vadd.f32 %v363, %v391
    %v394 = vxor.u32 %v393, 2147483648
    %v395 = vmul.f32 %v394, 1.442695
    %v396 = vpow.pop %v395
    %v397 = vadd.f32 %v396, 1.0
    %v398 = vrcp.pop %v397
    %v399 = vmul.f32 %v397, %v398
    %v400 = vsub.f32 1.0, %v399
    %v401 = vmul.f32 %v398, %v400
    %v402 = vadd.f32 %v398, %v401
    %vm403 = vweird.f32 %v397
    %vm404 = vweird.f32 %v398
    %vm405 = vmor %vm403, %vm404
    %v406 = vsel %vm405, %v398, %v402
    %v407 = vand.u32 2147483647, %v397
    %vm408 = vcmp.eq.f32.partialorder %v407, 8.507059e+37
    %v409 = vand.u32 %v397, 2147483648
    %v410 = vor.u32 1.1754944e-38, %v409
    %v411 = vsel %vm408, %v410, %v406
    %v412 = vmul.f32 1.0, %v411
    %413 = vrot.lane.b32.xlu0 %v391, 96
    %v414 = vpop.permute.xlu0 %413
    %v416 = vmul.f32 %v412, %v414
    %418 = vrot.lane.b32.xlu0 %v416, 32
    %v419 = vpop.permute.xlu0 %418
    %v421 = vadd.f32 %v363, %v419
    %v422 = vtanh.pop %v421
    %v423 = vsub.f32 1.0, %v412
    %425 = vrot.lane.b32.xlu0 %v422, 112
    %v426 = vpop.permute.xlu0 %425
    %v428 = vmul.f32 %v423, %v426
    %v429 = vrot.slane %v357, 6
    %v431 = vmul.f32 %v412, %v429
    %v432 = vadd.f32 %v428, %v431
    %v433 = vadd.f32 %v155, %v285
    %v434 = vadd.f32 %v433, %v167
    %v436 = vrot.slane %v432, 6
    %437 = vrot.lane.b32.xlu0 %v436, 112
    %v438 = vpop.permute.xlu0 %437
    %v439 = vsel %vm216, %v438, 0
    %441 = vmatpush.msra.mxu0 0.0
    %442 = vmatpush.msra.mxu0 0.0
    %443 = vmatpush.msra.mxu0 0.0
    %444 = vmatpush.msra.mxu0 0.0
    %445 = vmatpush.msra.mxu0 0.0
    %446 = vmatpush.msra.mxu0 0.0
    %447 = vmatpush.msra.mxu0 0.0
    %448 = vmatpush.msra.mxu0 0.0
    %449 = vmatpush.msra.mxu0 0.0
    %450 = vmatpush.msra.mxu0 0.0
    %451 = vmatpush.msra.mxu0 0.0
    %452 = vmatpush.msra.mxu0 0.0
    %453 = vmatpush.msra.mxu0 0.0
    %454 = vmatpush.msra.mxu0 0.0
    %455 = vmatpush.msra.mxu0 %v159
    %456 = vmatpush.msra.mxu0 %v158
    %457 = vmatmul.f32.gmra.mxu0 %v439
    %v458 = vpop.f32.mrf.mxu0
    %v459 = vadd.f32 %v169, %v458
    %460 = vdwg.mxu0
    %v461 = vadd.f32 %v434, %v459
    %v462 = vxor.u32 %v461, 2147483648
    %v463 = vmul.f32 %v462, 1.442695
    %v464 = vpow.pop %v463
    %v465 = vadd.f32 %v464, 1.0
    %v466 = vrcp.pop %v465
    %v467 = vmul.f32 %v465, %v466
    %v468 = vsub.f32 1.0, %v467
    %v469 = vmul.f32 %v466, %v468
    %v470 = vadd.f32 %v466, %v469
    %vm471 = vweird.f32 %v465
    %vm472 = vweird.f32 %v466
    %vm473 = vmor %vm471, %vm472
    %v474 = vsel %vm473, %v466, %v470
    %v475 = vand.u32 2147483647, %v465
    %vm476 = vcmp.eq.f32.partialorder %v475, 8.507059e+37
    %v477 = vand.u32 %v465, 2147483648
    %v478 = vor.u32 1.1754944e-38, %v477
    %v479 = vsel %vm476, %v478, %v474
    %v480 = vmul.f32 1.0, %v479
    %482 = vrot.lane.b32.xlu0 %v459, 96
    %v483 = vpop.permute.xlu0 %482
    %v485 = vmul.f32 %v480, %v483
    %487 = vrot.lane.b32.xlu0 %v485, 32
    %v488 = vpop.permute.xlu0 %487
    %v490 = vadd.f32 %v434, %v488
    %v491 = vtanh.pop %v490
    %v492 = vsub.f32 1.0, %v480
    %494 = vrot.lane.b32.xlu0 %v491, 112
    %v495 = vpop.permute.xlu0 %494
    %v497 = vmul.f32 %v492, %v495
    %v499 = vmul.f32 %v480, %v436
    %v500 = vadd.f32 %v497, %v499
    %v501 = vadd.f32 %v155, %v360
    %v502 = vadd.f32 %v501, %v167
    %504 = vrot.lane.b32.xlu0 %v500, 112
    %v505 = vpop.permute.xlu0 %504
    %v506 = vsel %vm216, %v505, 0
    %508 = vmatpush.msra.mxu0 0.0
    %509 = vmatpush.msra.mxu0 0.0
    %510 = vmatpush.msra.mxu0 0.0
    %511 = vmatpush.msra.mxu0 0.0
    %512 = vmatpush.msra.mxu0 0.0
    %513 = vmatpush.msra.mxu0 0.0
    %514 = vmatpush.msra.mxu0 0.0
    %515 = vmatpush.msra.mxu0 0.0
    %516 = vmatpush.msra.mxu0 0.0
    %517 = vmatpush.msra.mxu0 0.0
    %518 = vmatpush.msra.mxu0 0.0
    %519 = vmatpush.msra.mxu0 0.0
    %520 = vmatpush.msra.mxu0 0.0
    %521 = vmatpush.msra.mxu0 0.0
    %522 = vmatpush.msra.mxu0 %v159
    %523 = vmatpush.msra.mxu0 %v158
    %524 = vmatmul.f32.gmra.mxu0 %v506
    %v525 = vpop.f32.mrf.mxu0
    %v526 = vadd.f32 %v169, %v525
    %527 = vdwg.mxu0
    %v529 = vrot.slane %v526, 6
    %v531 = vadd.f32 %v502, %v529
    %v532 = vxor.u32 %v531, 2147483648
    %v533 = vmul.f32 %v532, 1.442695
    %v534 = vpow.pop %v533
    %v535 = vadd.f32 %v534, 1.0
    %v536 = vrcp.pop %v535
    %v537 = vmul.f32 %v535, %v536
    %v538 = vsub.f32 1.0, %v537
    %v539 = vmul.f32 %v536, %v538
    %v540 = vadd.f32 %v536, %v539
    %vm541 = vweird.f32 %v535
    %vm542 = vweird.f32 %v536
    %vm543 = vmor %vm541, %vm542
    %v544 = vsel %vm543, %v536, %v540
    %v545 = vand.u32 2147483647, %v535
    %vm546 = vcmp.eq.f32.partialorder %v545, 8.507059e+37
    %v547 = vand.u32 %v535, 2147483648
    %v548 = vor.u32 1.1754944e-38, %v547
    %v549 = vsel %vm546, %v548, %v544
    %v550 = vmul.f32 1.0, %v549
    %551 = vrot.lane.b32.xlu0 %v529, 96
    %v552 = vpop.permute.xlu0 %551
    %v554 = vmul.f32 %v550, %v552
    %556 = vrot.lane.b32.xlu0 %v554, 32
    %v557 = vpop.permute.xlu0 %556
    %v559 = vadd.f32 %v502, %v557
    %v560 = vtanh.pop %v559
    %v561 = vsub.f32 1.0, %v550
    %563 = vrot.lane.b32.xlu0 %v560, 112
    %v564 = vpop.permute.xlu0 %563
    %v566 = vmul.f32 %v561, %v564
    %v567 = vrot.slane %v500, 6
    %v569 = vmul.f32 %v550, %v567
    %v570 = vadd.f32 %v566, %v569
    %vm571 = vcmask 1041408
    %v572 = vsel %vm571, %v206, %v281
    %vm573 = vcmask 1043456
    %v574 = vsel %vm573, %v572, %v357
    %vm575 = vcmask 1045504
    %v576 = vsel %vm575, %v574, %v432
    %v577 = vsel %vm571, %v500, %v570
    %v578 = vld [vmem:[%s0 + $0xa0] sm:$0xff]
    %v579 = vld [vmem:[%s0 + $0xa8] sm:$0xff]
    %582 = vrot.lane.b32.xlu0 %v576, 112
    %v583 = vpop.permute.xlu0 %582
    %584 = vrot.lane.b32.xlu0 %v577, 112
    %v585 = vpop.permute.xlu0 %584
    %v586 = vsel %vm127, %v583, 0
    %v588 = vsel %vm127, %v585, 0
    %590 = vmatpush.msra.mxu0 0.0
    %591 = vmatpush.msra.mxu0 0.0
    %592 = vmatpush.msra.mxu0 0.0
    %593 = vmatpush.msra.mxu0 0.0
    %594 = vmatpush.msra.mxu0 0.0
    %595 = vmatpush.msra.mxu0 0.0
    %596 = vmatpush.msra.mxu0 0.0
    %597 = vmatpush.msra.mxu0 0.0
    %598 = vmatpush.msra.mxu0 0.0
    %599 = vmatpush.msra.mxu0 0.0
    %600 = vmatpush.msra.mxu0 0.0
    %601 = vmatpush.msra.mxu0 0.0
    %602 = vmatpush.msra.mxu0 0.0
    %603 = vmatpush.msra.mxu0 0.0
    %604 = vmatpush.msra.mxu0 0.0
    %605 = vmatpush.msra.mxu0 %v578
    %606 = vmatmul.f32.gmra.mxu0 %v586
    %v607 = vpop.f32.mrf.mxu0
    %v608 = vadd.f32 0.0, %v607
    %609 = vmatmul.f32.gmra.mxu0 %v588
    %v610 = vpop.f32.mrf.mxu0
    %v611 = vadd.f32 0.0, %v610
    %612 = vdwg.mxu0
    %613 = vrot.lane.b32.xlu0 %v576, 104
    %v614 = vpop.permute.xlu0 %613
    %615 = vrot.lane.b32.xlu0 %v577, 104
    %v616 = vpop.permute.xlu0 %615
    %v617 = vsel %vm127, %v614, 0
    %v619 = vsel %vm127, %v616, 0
    %621 = vmatpush.msra.mxu0 0.0
    %622 = vmatpush.msra.mxu0 0.0
    %623 = vmatpush.msra.mxu0 0.0
    %624 = vmatpush.msra.mxu0 0.0
    %625 = vmatpush.msra.mxu0 0.0
    %626 = vmatpush.msra.mxu0 0.0
    %627 = vmatpush.msra.mxu0 0.0
    %628 = vmatpush.msra.mxu0 0.0
    %629 = vmatpush.msra.mxu0 0.0
    %630 = vmatpush.msra.mxu0 0.0
    %631 = vmatpush.msra.mxu0 0.0
    %632 = vmatpush.msra.mxu0 0.0
    %633 = vmatpush.msra.mxu0 0.0
    %634 = vmatpush.msra.mxu0 0.0
    %635 = vmatpush.msra.mxu0 0.0
    %636 = vmatpush.msra.mxu0 %v579
    %637 = vmatmul.f32.gmra.mxu0 %v617
    %v638 = vpop.f32.mrf.mxu0
    %v639 = vadd.f32 0.0, %v638
    %640 = vmatmul.f32.gmra.mxu0 %v619
    %v641 = vpop.f32.mrf.mxu0
    %v642 = vadd.f32 0.0, %v641
    %643 = vdwg.mxu0
    %v645 = vrot.slane %v642, 2
    %v647 = vadd.f32 %v608, %v645
    %v648 = vrot.slane %v642, 6
    %v650 = vadd.f32 %v608, %v648
    %v652 = vrot.slane %v639, 2
    %v654 = vadd.f32 %v608, %v652
    %v655 = vrot.slane %v639, 6
    %v657 = vadd.f32 %v608, %v655
    %v658 = vadd.f32 %v611, %v652
    %v659 = vadd.f32 %v611, %v655
    %v660 = vld [vmem:[%s0 + $0xb0] sm:$0x1]
    %v661 = vld [vmem:[%s0 + $0xb8] sm:$0xff]
    %v662 = vld [vmem:[%s0 + $0xc0] sm:$0xff]
    %v663 = vld [vmem:[%s0 + $0xc8] sm:$0x1]
    %v665 = vrot.slane %v659, 2
    %666 = vrot.lane.b32.xlu0 %v665, 80
    %v667 = vpop.permute.xlu0 %666
    %v669 = vadd.f32 %v647, %v667
    %v670 = vperm.slane %v660, 0
    %v671 = vadd.f32 %v669, %v670
    %v672 = vperm.slane %v663, 0
    %v673 = vadd.f32 %v671, %v672
    %v674 = vxor.u32 %v673, 2147483648
    %v675 = vmul.f32 %v674, 1.442695
    %v676 = vpow.pop %v675
    %v677 = vadd.f32 %v676, 1.0
    %v678 = vrcp.pop %v677
    %v679 = vmul.f32 %v677, %v678
    %v680 = vsub.f32 1.0, %v679
    %v681 = vmul.f32 %v678, %v680
    %v682 = vadd.f32 %v678, %v681
    %vm683 = vweird.f32 %v677
    %vm684 = vweird.f32 %v678
    %vm685 = vmor %vm683, %vm684
    %v686 = vsel %vm685, %v678, %v682
    %v687 = vand.u32 2147483647, %v677
    %vm688 = vcmp.eq.f32.partialorder %v687, 8.507059e+37
    %v689 = vand.u32 %v677, 2147483648
    %v690 = vor.u32 1.1754944e-38, %v689
    %v691 = vsel %vm688, %v690, %v686
    %v692 = vmul.f32 1.0, %v691
    %694 = vrot.lane.b32.xlu0 %v672, 96
    %v695 = vpop.permute.xlu0 %694
    %v697 = vmul.f32 %v692, %v695
    %699 = vrot.lane.b32.xlu0 %v697, 32
    %v700 = vpop.permute.xlu0 %699
    %v702 = vadd.f32 %v671, %v700
    %v703 = vtanh.pop %v702
    %v704 = vsub.f32 1.0, %v692
    %706 = vrot.lane.b32.xlu0 %v703, 112
    %v707 = vpop.permute.xlu0 %706
    %v709 = vmul.f32 %v704, %v707
    %v711 = vrot.slane %v658, 6
    %712 = vrot.lane.b32.xlu0 %v711, 80
    %v713 = vpop.permute.xlu0 %712
    %v715 = vadd.f32 %v650, %v713
    %v716 = vadd.f32 %v715, %v670
    %718 = vrot.lane.b32.xlu0 %v709, 112
    %v719 = vpop.permute.xlu0 %718
    %v720 = vsel %vm216, %v719, 0
    %722 = vmatpush.msra.mxu0 0.0
    %723 = vmatpush.msra.mxu0 0.0
    %724 = vmatpush.msra.mxu0 0.0
    %725 = vmatpush.msra.mxu0 0.0
    %726 = vmatpush.msra.mxu0 0.0
    %727 = vmatpush.msra.mxu0 0.0
    %728 = vmatpush.msra.mxu0 0.0
    %729 = vmatpush.msra.mxu0 0.0
    %730 = vmatpush.msra.mxu0 0.0
    %731 = vmatpush.msra.mxu0 0.0
    %732 = vmatpush.msra.mxu0 0.0
    %733 = vmatpush.msra.mxu0 0.0
    %734 = vmatpush.msra.mxu0 0.0
    %735 = vmatpush.msra.mxu0 0.0
    %736 = vmatpush.msra.mxu0 %v662
    %737 = vmatpush.msra.mxu0 %v661
    %738 = vmatmul.f32.gmra.mxu0 %v720
    %v739 = vpop.f32.mrf.mxu0
    %v740 = vadd.f32 %v672, %v739
    %741 = vdwg.mxu0
    %v743 = vrot.slane %v740, 6
    %v745 = vadd.f32 %v716, %v743
    %v746 = vxor.u32 %v745, 2147483648
    %v747 = vmul.f32 %v746, 1.442695
    %v748 = vpow.pop %v747
    %v749 = vadd.f32 %v748, 1.0
    %v750 = vrcp.pop %v749
    %v751 = vmul.f32 %v749, %v750
    %v752 = vsub.f32 1.0, %v751
    %v753 = vmul.f32 %v750, %v752
    %v754 = vadd.f32 %v750, %v753
    %vm755 = vweird.f32 %v749
    %vm756 = vweird.f32 %v750
    %vm757 = vmor %vm755, %vm756
    %v758 = vsel %vm757, %v750, %v754
    %v759 = vand.u32 2147483647, %v749
    %vm760 = vcmp.eq.f32.partialorder %v759, 8.507059e+37
    %v761 = vand.u32 %v749, 2147483648
    %v762 = vor.u32 1.1754944e-38, %v761
    %v763 = vsel %vm760, %v762, %v758
    %v764 = vmul.f32 1.0, %v763
    %765 = vrot.lane.b32.xlu0 %v743, 96
    %v766 = vpop.permute.xlu0 %765
    %v768 = vmul.f32 %v764, %v766
    %770 = vrot.lane.b32.xlu0 %v768, 32
    %v771 = vpop.permute.xlu0 %770
    %v773 = vadd.f32 %v716, %v771
    %v774 = vtanh.pop %v773
    %v775 = vsub.f32 1.0, %v764
    %777 = vrot.lane.b32.xlu0 %v774, 112
    %v778 = vpop.permute.xlu0 %777
    %v780 = vmul.f32 %v775, %v778
    %v781 = vrot.slane %v709, 6
    %v783 = vmul.f32 %v764, %v781
    %v784 = vadd.f32 %v780, %v783
    %v786 = vrot.slane %v657, 2
    %787 = vrot.lane.b32.xlu0 %v786, 80
    %v788 = vpop.permute.xlu0 %787
    %v790 = vadd.f32 %v654, %v788
    %v791 = vadd.f32 %v790, %v670
    %v793 = vrot.slane %v784, 2
    %794 = vrot.lane.b32.xlu0 %v793, 112
    %v795 = vpop.permute.xlu0 %794
    %v796 = vsel %vm216, %v795, 0
    %798 = vmatpush.msra.mxu0 0.0
    %799 = vmatpush.msra.mxu0 0.0
    %800 = vmatpush.msra.mxu0 0.0
    %801 = vmatpush.msra.mxu0 0.0
    %802 = vmatpush.msra.mxu0 0.0
    %803 = vmatpush.msra.mxu0 0.0
    %804 = vmatpush.msra.mxu0 0.0
    %805 = vmatpush.msra.mxu0 0.0
    %806 = vmatpush.msra.mxu0 0.0
    %807 = vmatpush.msra.mxu0 0.0
    %808 = vmatpush.msra.mxu0 0.0
    %809 = vmatpush.msra.mxu0 0.0
    %810 = vmatpush.msra.mxu0 0.0
    %811 = vmatpush.msra.mxu0 0.0
    %812 = vmatpush.msra.mxu0 %v662
    %813 = vmatpush.msra.mxu0 %v661
    %814 = vmatmul.f32.gmra.mxu0 %v796
    %v815 = vpop.f32.mrf.mxu0
    %v816 = vadd.f32 %v672, %v815
    %817 = vdwg.mxu0
    %v819 = vrot.slane %v816, 4
    %v821 = vadd.f32 %v791, %v819
    %v822 = vxor.u32 %v821, 2147483648
    %v823 = vmul.f32 %v822, 1.442695
    %v824 = vpow.pop %v823
    %v825 = vadd.f32 %v824, 1.0
    %v826 = vrcp.pop %v825
    %v827 = vmul.f32 %v825, %v826
    %v828 = vsub.f32 1.0, %v827
    %v829 = vmul.f32 %v826, %v828
    %v830 = vadd.f32 %v826, %v829
    %vm831 = vweird.f32 %v825
    %vm832 = vweird.f32 %v826
    %vm833 = vmor %vm831, %vm832
    %v834 = vsel %vm833, %v826, %v830
    %v835 = vand.u32 2147483647, %v825
    %vm836 = vcmp.eq.f32.partialorder %v835, 8.507059e+37
    %v837 = vand.u32 %v825, 2147483648
    %v838 = vor.u32 1.1754944e-38, %v837
    %v839 = vsel %vm836, %v838, %v834
    %v840 = vmul.f32 1.0, %v839
    %841 = vrot.lane.b32.xlu0 %v819, 96
    %v842 = vpop.permute.xlu0 %841
    %v844 = vmul.f32 %v840, %v842
    %846 = vrot.lane.b32.xlu0 %v844, 32
    %v847 = vpop.permute.xlu0 %846
    %v849 = vadd.f32 %v791, %v847
    %v850 = vtanh.pop %v849
    %v851 = vsub.f32 1.0, %v840
    %853 = vrot.lane.b32.xlu0 %v850, 112
    %v854 = vpop.permute.xlu0 %853
    %v856 = vmul.f32 %v851, %v854
    %v857 = vrot.slane %v784, 6
    %v859 = vmul.f32 %v840, %v857
    %v860 = vadd.f32 %v856, %v859
    %v862 = vrot.slane %v654, 6
    %863 = vrot.lane.b32.xlu0 %v862, 80
    %v864 = vpop.permute.xlu0 %863
    %v866 = vadd.f32 %v657, %v864
    %v867 = vadd.f32 %v866, %v670
    %v869 = vrot.slane %v860, 4
    %870 = vrot.lane.b32.xlu0 %v869, 112
    %v871 = vpop.permute.xlu0 %870
    %v872 = vsel %vm216, %v871, 0
    %874 = vmatpush.msra.mxu0 0.0
    %875 = vmatpush.msra.mxu0 0.0
    %876 = vmatpush.msra.mxu0 0.0
    %877 = vmatpush.msra.mxu0 0.0
    %878 = vmatpush.msra.mxu0 0.0
    %879 = vmatpush.msra.mxu0 0.0
    %880 = vmatpush.msra.mxu0 0.0
    %881 = vmatpush.msra.mxu0 0.0
    %882 = vmatpush.msra.mxu0 0.0
    %883 = vmatpush.msra.mxu0 0.0
    %884 = vmatpush.msra.mxu0 0.0
    %885 = vmatpush.msra.mxu0 0.0
    %886 = vmatpush.msra.mxu0 0.0
    %887 = vmatpush.msra.mxu0 0.0
    %888 = vmatpush.msra.mxu0 %v662
    %889 = vmatpush.msra.mxu0 %v661
    %890 = vmatmul.f32.gmra.mxu0 %v872
    %v891 = vpop.f32.mrf.mxu0
    %v892 = vadd.f32 %v672, %v891
    %893 = vdwg.mxu0
    %v895 = vrot.slane %v892, 2
    %v897 = vadd.f32 %v867, %v895
    %v898 = vxor.u32 %v897, 2147483648
    %v899 = vmul.f32 %v898, 1.442695
    %v900 = vpow.pop %v899
    %v901 = vadd.f32 %v900, 1.0
    %v902 = vrcp.pop %v901
    %v903 = vmul.f32 %v901, %v902
    %v904 = vsub.f32 1.0, %v903
    %v905 = vmul.f32 %v902, %v904
    %v906 = vadd.f32 %v902, %v905
    %vm907 = vweird.f32 %v901
    %vm908 = vweird.f32 %v902
    %vm909 = vmor %vm907, %vm908
    %v910 = vsel %vm909, %v902, %v906
    %v911 = vand.u32 2147483647, %v901
    %vm912 = vcmp.eq.f32.partialorder %v911, 8.507059e+37
    %v913 = vand.u32 %v901, 2147483648
    %v914 = vor.u32 1.1754944e-38, %v913
    %v915 = vsel %vm912, %v914, %v910
    %v916 = vmul.f32 1.0, %v915
    %917 = vrot.lane.b32.xlu0 %v895, 96
    %v918 = vpop.permute.xlu0 %917
    %v920 = vmul.f32 %v916, %v918
    %922 = vrot.lane.b32.xlu0 %v920, 32
    %v923 = vpop.permute.xlu0 %922
    %v925 = vadd.f32 %v867, %v923
    %v926 = vtanh.pop %v925
    %v927 = vsub.f32 1.0, %v916
    %929 = vrot.lane.b32.xlu0 %v926, 112
    %v930 = vpop.permute.xlu0 %929
    %v932 = vmul.f32 %v927, %v930
    %v933 = vrot.slane %v860, 6
    %v935 = vmul.f32 %v916, %v933
    %v936 = vadd.f32 %v932, %v935
    %v938 = vrot.slane %v650, 2
    %939 = vrot.lane.b32.xlu0 %v938, 80
    %v940 = vpop.permute.xlu0 %939
    %v942 = vadd.f32 %v658, %v940
    %v943 = vadd.f32 %v942, %v670
    %v945 = vrot.slane %v936, 6
    %946 = vrot.lane.b32.xlu0 %v945, 112
    %v947 = vpop.permute.xlu0 %946
    %v948 = vsel %vm216, %v947, 0
    %950 = vmatpush.msra.mxu0 0.0
    %951 = vmatpush.msra.mxu0 0.0
    %952 = vmatpush.msra.mxu0 0.0
    %953 = vmatpush.msra.mxu0 0.0
    %954 = vmatpush.msra.mxu0 0.0
    %955 = vmatpush.msra.mxu0 0.0
    %956 = vmatpush.msra.mxu0 0.0
    %957 = vmatpush.msra.mxu0 0.0
    %958 = vmatpush.msra.mxu0 0.0
    %959 = vmatpush.msra.mxu0 0.0
    %960 = vmatpush.msra.mxu0 0.0
    %961 = vmatpush.msra.mxu0 0.0
    %962 = vmatpush.msra.mxu0 0.0
    %963 = vmatpush.msra.mxu0 0.0
    %964 = vmatpush.msra.mxu0 %v662
    %965 = vmatpush.msra.mxu0 %v661
    %966 = vmatmul.f32.gmra.mxu0 %v948
    %v967 = vpop.f32.mrf.mxu0
    %v968 = vadd.f32 %v672, %v967
    %969 = vdwg.mxu0
    %v970 = vadd.f32 %v943, %v968
    %v971 = vxor.u32 %v970, 2147483648
    %v972 = vmul.f32 %v971, 1.442695
    %v973 = vpow.pop %v972
    %v974 = vadd.f32 %v973, 1.0
    %v975 = vrcp.pop %v974
    %v976 = vmul.f32 %v974, %v975
    %v977 = vsub.f32 1.0, %v976
    %v978 = vmul.f32 %v975, %v977
    %v979 = vadd.f32 %v975, %v978
    %vm980 = vweird.f32 %v974
    %vm981 = vweird.f32 %v975
    %vm982 = vmor %vm980, %vm981
    %v983 = vsel %vm982, %v975, %v979
    %v984 = vand.u32 2147483647, %v974
    %vm985 = vcmp.eq.f32.partialorder %v984, 8.507059e+37
    %v986 = vand.u32 %v974, 2147483648
    %v987 = vor.u32 1.1754944e-38, %v986
    %v988 = vsel %vm985, %v987, %v983
    %v989 = vmul.f32 1.0, %v988
    %991 = vrot.lane.b32.xlu0 %v968, 96
    %v992 = vpop.permute.xlu0 %991
    %v994 = vmul.f32 %v989, %v992
    %996 = vrot.lane.b32.xlu0 %v994, 32
    %v997 = vpop.permute.xlu0 %996
    %v999 = vadd.f32 %v943, %v997
    %v1000 = vtanh.pop %v999
    %v1001 = vsub.f32 1.0, %v989
    %1003 = vrot.lane.b32.xlu0 %v1000, 112
    %v1004 = vpop.permute.xlu0 %1003
    %v1006 = vmul.f32 %v1001, %v1004
    %v1008 = vmul.f32 %v989, %v945
    %v1009 = vadd.f32 %v1006, %v1008
    %v1011 = vrot.slane %v647, 6
    %1012 = vrot.lane.b32.xlu0 %v1011, 80
    %v1013 = vpop.permute.xlu0 %1012
    %v1015 = vadd.f32 %v659, %v1013
    %v1016 = vadd.f32 %v1015, %v670
    %1018 = vrot.lane.b32.xlu0 %v1009, 112
    %v1019 = vpop.permute.xlu0 %1018
    %v1020 = vsel %vm216, %v1019, 0
    %1022 = vmatpush.msra.mxu0 0.0
    %1023 = vmatpush.msra.mxu0 0.0
    %1024 = vmatpush.msra.mxu0 0.0
    %1025 = vmatpush.msra.mxu0 0.0
    %1026 = vmatpush.msra.mxu0 0.0
    %1027 = vmatpush.msra.mxu0 0.0
    %1028 = vmatpush.msra.mxu0 0.0
    %1029 = vmatpush.msra.mxu0 0.0
    %1030 = vmatpush.msra.mxu0 0.0
    %1031 = vmatpush.msra.mxu0 0.0
    %1032 = vmatpush.msra.mxu0 0.0
    %1033 = vmatpush.msra.mxu0 0.0
    %1034 = vmatpush.msra.mxu0 0.0
    %1035 = vmatpush.msra.mxu0 0.0
    %1036 = vmatpush.msra.mxu0 %v662
    %1037 = vmatpush.msra.mxu0 %v661
    %1038 = vmatmul.f32.gmra.mxu0 %v1020
    %v1039 = vpop.f32.mrf.mxu0
    %v1040 = vadd.f32 %v672, %v1039
    %1041 = vdwg.mxu0
    %v1043 = vrot.slane %v1040, 6
    %v1045 = vadd.f32 %v1016, %v1043
    %v1046 = vxor.u32 %v1045, 2147483648
    %v1047 = vmul.f32 %v1046, 1.442695
    %v1048 = vpow.pop %v1047
    %v1049 = vadd.f32 %v1048, 1.0
    %v1050 = vrcp.pop %v1049
    %v1051 = vmul.f32 %v1049, %v1050
    %v1052 = vsub.f32 1.0, %v1051
    %v1053 = vmul.f32 %v1050, %v1052
    %v1054 = vadd.f32 %v1050, %v1053
    %vm1055 = vweird.f32 %v1049
    %vm1056 = vweird.f32 %v1050
    %vm1057 = vmor %vm1055, %vm1056
    %v1058 = vsel %vm1057, %v1050, %v1054
    %v1059 = vand.u32 2147483647, %v1049
    %vm1060 = vcmp.eq.f32.partialorder %v1059, 8.507059e+37
    %v1061 = vand.u32 %v1049, 2147483648
    %v1062 = vor.u32 1.1754944e-38, %v1061
    %v1063 = vsel %vm1060, %v1062, %v1058
    %v1064 = vmul.f32 1.0, %v1063
    %1065 = vrot.lane.b32.xlu0 %v1043, 96
    %v1066 = vpop.permute.xlu0 %1065
    %v1068 = vmul.f32 %v1064, %v1066
    %1070 = vrot.lane.b32.xlu0 %v1068, 32
    %v1071 = vpop.permute.xlu0 %1070
    %v1073 = vadd.f32 %v1016, %v1071
    %v1074 = vtanh.pop %v1073
    %v1075 = vsub.f32 1.0, %v1064
    %1077 = vrot.lane.b32.xlu0 %v1074, 112
    %v1078 = vpop.permute.xlu0 %1077
    %v1080 = vmul.f32 %v1075, %v1078
    %v1081 = vrot.slane %v1009, 6
    %v1083 = vmul.f32 %v1064, %v1081
    %v1084 = vadd.f32 %v1080, %v1083
    %v1085 = vld [vmem:[%s0 + $0xd0] sm:$0xff]
    %v1086 = vld [vmem:[%s0 + $0xd8] sm:$0xff]
    %v1087 = vld [vmem:[%s0 + $0xe0] sm:$0xff]
    %v1088 = vld [vmem:[%s0 + $0xe8] sm:$0xff]
    %v1089 = vld [vmem:[%s0 + $0xf0] sm:$0x1]
    %v1091 = vrot.slane %v570, 2
    %1092 = vrot.lane.b32.xlu0 %v1091, 112
    %v1093 = vpop.permute.xlu0 %1092
    %v1094 = vsel %vm216, %v1093, 0
    %1096 = vmatpush.msra.mxu0 0.0
    %1097 = vmatpush.msra.mxu0 0.0
    %1098 = vmatpush.msra.mxu0 0.0
    %1099 = vmatpush.msra.mxu0 0.0
    %1100 = vmatpush.msra.mxu0 0.0
    %1101 = vmatpush.msra.mxu0 0.0
    %1102 = vmatpush.msra.mxu0 0.0
    %1103 = vmatpush.msra.mxu0 0.0
    %1104 = vmatpush.msra.mxu0 0.0
    %1105 = vmatpush.msra.mxu0 0.0
    %1106 = vmatpush.msra.mxu0 0.0
    %1107 = vmatpush.msra.mxu0 0.0
    %1108 = vmatpush.msra.mxu0 0.0
    %1109 = vmatpush.msra.mxu0 0.0
    %1110 = vmatpush.msra.mxu0 %v1086
    %1111 = vmatpush.msra.mxu0 %v1085
    %1112 = vmatmul.f32.gmra.mxu0 %v1094
    %v1113 = vpop.f32.mrf.mxu0
    %v1114 = vadd.f32 0.0, %v1113
    %1115 = vdwg.mxu0
    %v1116 = vperm.slane %v1089, 0
    %v1117 = vadd.f32 %v1116, %v1114
    %v1119 = vrot.slane %v1084, 2
    %1120 = vrot.lane.b32.xlu0 %v1119, 112
    %v1121 = vpop.permute.xlu0 %1120
    %v1122 = vsel %vm216, %v1121, 0
    %1124 = vmatpush.msra.mxu0 0.0
    %1125 = vmatpush.msra.mxu0 0.0
    %1126 = vmatpush.msra.mxu0 0.0
    %1127 = vmatpush.msra.mxu0 0.0
    %1128 = vmatpush.msra.mxu0 0.0
    %1129 = vmatpush.msra.mxu0 0.0
    %1130 = vmatpush.msra.mxu0 0.0
    %1131 = vmatpush.msra.mxu0 0.0
    %1132 = vmatpush.msra.mxu0 0.0
    %1133 = vmatpush.msra.mxu0 0.0
    %1134 = vmatpush.msra.mxu0 0.0
    %1135 = vmatpush.msra.mxu0 0.0
    %1136 = vmatpush.msra.mxu0 0.0
    %1137 = vmatpush.msra.mxu0 0.0
    %1138 = vmatpush.msra.mxu0 %v1088
    %1139 = vmatpush.msra.mxu0 %v1087
    %1140 = vmatmul.f32.gmra.mxu0 %v1122
    %v1141 = vpop.f32.mrf.mxu0
    %v1142 = vadd.f32 0.0, %v1141
    %1143 = vdwg.mxu0
    %v1144 = vadd.f32 %v1117, %v1142
    %v1145 = vmax.f32 %v1144, 0.0
    %v1146 = vld [vmem:[%s0 + $0x158] sm:$0xff]
    %v1147 = vld [vmem:[%s0 + $0x160] sm:$0xff]
    %v1148 = vld [vmem:[%s0 + $0x168] sm:$0xff]
    %v1149 = vld [vmem:[%s0 + $0x170] sm:$0xff]
    %vm1150 = vcmask 261120
    %v1152 = vsel %vm1150, %v1145, 0
    %1154 = vmatpush.msra.mxu0 0.0
    %1155 = vmatpush.msra.mxu0 0.0
    %1156 = vmatpush.msra.mxu0 0.0
    %1157 = vmatpush.msra.mxu0 0.0
    %1158 = vmatpush.msra.mxu0 0.0
    %1159 = vmatpush.msra.mxu0 0.0
    %1160 = vmatpush.msra.mxu0 0.0
    %1161 = vmatpush.msra.mxu0 0.0
    %1162 = vmatpush.msra.mxu0 0.0
    %1163 = vmatpush.msra.mxu0 0.0
    %1164 = vmatpush.msra.mxu0 0.0
    %1165 = vmatpush.msra.mxu0 0.0
    %1166 = vmatpush.msra.mxu0 %v1149
    %1167 = vmatpush.msra.mxu0 %v1148
    %1168 = vmatpush.msra.mxu0 %v1147
    %1169 = vmatpush.msra.mxu0 %v1146
    %1170 = vmatmul.f32.gmra.mxu0 %v1152
    %v1171 = vpop.f32.mrf.mxu0
    %v1172 = vadd.f32 0.0, %v1171
    %1173 = vdwg.mxu0
    %v1174 = vadd.f32 %v122, %v1172
    %v1175 = vmax.f32 %v1174, 0.0
    %v1176 = vld [vmem:[%s0 + $0x180] sm:$0xff]
    %v1177 = vld [vmem:[%s0 + $0x188] sm:$0xff]
    %v1178 = vld [vmem:[%s0 + $0x190] sm:$0xff]
    %v1179 = vld [vmem:[%s0 + $0x198] sm:$0xff]
    %v1180 = vld [vmem:[%s0 + $0x1a0] sm:$0xff]
    %v1181 = vld [vmem:[%s0 + $0x1a8] sm:$0xff]
    %v1182 = vld [vmem:[%s0 + $0x1b0] sm:$0xff]
    %v1183 = vld [vmem:[%s0 + $0x1b8] sm:$0xff]
    %v1184 = vld [vmem:[%s0 + $0x1c0] sm:$0xff]
    %v1185 = vld [vmem:[%s0 + $0x1c8] sm:$0xff]
    %v1186 = vld [vmem:[%s0 + $0x1d0] sm:$0xff]
    %v1187 = vld [vmem:[%s0 + $0x1d8] sm:$0xff]
    %v1188 = vld [vmem:[%s0 + $0x240] sm:$0x1]
    %v1189 = vperm.slane %v1188, 0
    %v1191 = vsel %vm62, %v1175, 0
    %1193 = vmatpush.msra.mxu0 0.0
    %1194 = vmatpush.msra.mxu0 0.0
    %1195 = vmatpush.msra.mxu0 0.0
    %1196 = vmatpush.msra.mxu0 0.0
    %1197 = vmatpush.msra.mxu0 %v1187
    %1198 = vmatpush.msra.mxu0 %v1186
    %1199 = vmatpush.msra.mxu0 %v1185
    %1200 = vmatpush.msra.mxu0 %v1184
    %1201 = vmatpush.msra.mxu0 %v1183
    %1202 = vmatpush.msra.mxu0 %v1182
    %1203 = vmatpush.msra.mxu0 %v1181
    %1204 = vmatpush.msra.mxu0 %v1180
    %1205 = vmatpush.msra.mxu0 %v1179
    %1206 = vmatpush.msra.mxu0 %v1178
    %1207 = vmatpush.msra.mxu0 %v1177
    %1208 = vmatpush.msra.mxu0 %v1176
    %1209 = vmatmul.f32.gmra.mxu0 %v1191
    %v1210 = vpop.f32.mrf.mxu0
    %v1211 = vadd.f32 %v1189, %v1210
    %1212 = vdwg.mxu0
    %v1213 = vmax.f32 %v1211, 0.0
    %v1214 = vld [vmem:[%s0 + $0x1e0] sm:$0xff]
    %v1215 = vld [vmem:[%s0 + $0x1e8] sm:$0xff]
    %v1216 = vld [vmem:[%s0 + $0x1f0] sm:$0xff]
    %v1217 = vld [vmem:[%s0 + $0x1f8] sm:$0xff]
    %v1218 = vld [vmem:[%s0 + $0x200] sm:$0xff]
    %v1219 = vld [vmem:[%s0 + $0x208] sm:$0xff]
    %v1220 = vld [vmem:[%s0 + $0x210] sm:$0xff]
    %v1221 = vld [vmem:[%s0 + $0x218] sm:$0xff]
    %v1222 = vld [vmem:[%s0 + $0x220] sm:$0xff]
    %v1223 = vld [vmem:[%s0 + $0x228] sm:$0xff]
    %v1224 = vld [vmem:[%s0 + $0x230] sm:$0xff]
    %v1225 = vld [vmem:[%s0 + $0x238] sm:$0xff]
    %v1226 = vld [vmem:[%s0 + $0x248] sm:$0x1]
    %v1227 = vperm.slane %v1226, 0
    %1228 = vmatpush.msra.mxu0 0.0
    %1229 = vmatpush.msra.mxu0 0.0
    %1230 = vmatpush.msra.mxu0 0.0
    %1231 = vmatpush.msra.mxu0 0.0
    %1232 = vmatpush.msra.mxu0 %v1225
    %1233 = vmatpush.msra.mxu0 %v1224
    %1234 = vmatpush.msra.mxu0 %v1223
    %1235 = vmatpush.msra.mxu0 %v1222
    %1236 = vmatpush.msra.mxu0 %v1221
    %1237 = vmatpush.msra.mxu0 %v1220
    %1238 = vmatpush.msra.mxu0 %v1219
    %1239 = vmatpush.msra.mxu0 %v1218
    %1240 = vmatpush.msra.mxu0 %v1217
    %1241 = vmatpush.msra.mxu0 %v1216
    %1242 = vmatpush.msra.mxu0 %v1215
    %1243 = vmatpush.msra.mxu0 %v1214
    %1244 = vmatmul.f32.gmra.mxu0 %v1191
    %v1245 = vpop.f32.mrf.mxu0
    %v1246 = vadd.f32 %v1227, %v1245
    %1247 = vdwg.mxu0
    %v1248 = vmax.f32 %v1246, 0.0
    %v1249 = vld [vmem:[%s0 + $0x250] sm:$0xff]
    %v1250 = vld [vmem:[%s0 + $0x258] sm:$0xff]
    %v1251 = vld [vmem:[%s0 + $0x260] sm:$0xff]
    %v1252 = vld [vmem:[%s0 + $0x268] sm:$0xff]
    %v1253 = vld [vmem:[%s0 + $0x270] sm:$0xff]
    %v1254 = vld [vmem:[%s0 + $0x278] sm:$0xff]
    %v1255 = vld [vmem:[%s0 + $0x280] sm:$0xff]
    %v1256 = vld [vmem:[%s0 + $0x288] sm:$0xff]
    %v1257 = vld [vmem:[%s0 + $0x290] sm:$0xff]
    %v1258 = vld [vmem:[%s0 + $0x298] sm:$0xff]
    %v1259 = vld [vmem:[%s0 + $0x2a0] sm:$0xff]
    %v1260 = vld [vmem:[%s0 + $0x2a8] sm:$0xff]
    %v1261 = vld [vmem:[%s0 + $0x2b0] sm:$0xff]
    %v1262 = vld [vmem:[%s0 + $0x2b8] sm:$0xff]
    %v1263 = vld [vmem:[%s0 + $0x2c0] sm:$0xff]
    %v1264 = vld [vmem:[%s0 + $0x2c8] sm:$0xff]
    %v1265 = vld [vmem:[%s0 + $0x2d0] sm:$0xff]
    %v1266 = vld [vmem:[%s0 + $0x2d8] sm:$0xff]
    %v1267 = vld [vmem:[%s0 + $0x2e0] sm:$0xff]
    %v1268 = vld [vmem:[%s0 + $0x2e8] sm:$0xff]
    %v1269 = vld [vmem:[%s0 + $0x2f0] sm:$0xff]
    %v1270 = vld [vmem:[%s0 + $0x2f8] sm:$0xff]
    %v1271 = vld [vmem:[%s0 + $0x300] sm:$0xff]
    %v1272 = vld [vmem:[%s0 + $0x308] sm:$0xff]
    %v1274 = vsel %vm62, %v1248, 0
    %1276 = vmatpush.msra.mxu0 0.0
    %1277 = vmatpush.msra.mxu0 0.0
    %1278 = vmatpush.msra.mxu0 0.0
    %1279 = vmatpush.msra.mxu0 0.0
    %1280 = vmatpush.msra.mxu0 %v1272
    %1281 = vmatpush.msra.mxu0 %v1271
    %1282 = vmatpush.msra.mxu0 %v1270
    %1283 = vmatpush.msra.mxu0 %v1269
    %1284 = vmatpush.msra.mxu0 %v1268
    %1285 = vmatpush.msra.mxu0 %v1267
    %1286 = vmatpush.msra.mxu0 %v1266
    %1287 = vmatpush.msra.mxu0 %v1265
    %1288 = vmatpush.msra.mxu0 %v1264
    %1289 = vmatpush.msra.mxu0 %v1263
    %1290 = vmatpush.msra.mxu0 %v1262
    %1291 = vmatpush.msra.mxu0 %v1261
    %1292 = vmatmul.f32.gmra.mxu0 %v1274
    %v1293 = vpop.f32.mrf.mxu0
    %v1294 = vadd.f32 0.0, %v1293
    %1295 = vdwg.mxu0
    %v1297 = vsel %vm62, %v1213, 0
    %1299 = vmatpush.msra.mxu0 0.0
    %1300 = vmatpush.msra.mxu0 0.0
    %1301 = vmatpush.msra.mxu0 0.0
    %1302 = vmatpush.msra.mxu0 0.0
    %1303 = vmatpush.msra.mxu0 %v1260
    %1304 = vmatpush.msra.mxu0 %v1259
    %1305 = vmatpush.msra.mxu0 %v1258
    %1306 = vmatpush.msra.mxu0 %v1257
    %1307 = vmatpush.msra.mxu0 %v1256
    %1308 = vmatpush.msra.mxu0 %v1255
    %1309 = vmatpush.msra.mxu0 %v1254
    %1310 = vmatpush.msra.mxu0 %v1253
    %1311 = vmatpush.msra.mxu0 %v1252
    %1312 = vmatpush.msra.mxu0 %v1251
    %1313 = vmatpush.msra.mxu0 %v1250
    %1314 = vmatpush.msra.mxu0 %v1249
    %1315 = vmatmul.f32.gmra.mxu0 %v1297
    %v1316 = vpop.f32.mrf.mxu0
    %v1317 = vadd.f32 %v1294, %v1316
    %1318 = vdwg.mxu0
    %v1319 = vld [vmem:[%s0 + $0x310] sm:$0x1]
    %v1320 = vperm.slane %v1319, 0
    %v1321 = vadd.f32 %v1317, %v1320
    %vm1322 = vcmask 189440
    %1323 = vst.msk [vmem:[#allocation2] sm:$0x3] %vm1322, %v1321
    // Predicated region
    $region14: #{encoder_forward.1} parent=1 // pred_check
      _
    $region15: #{encoder_forward.1} parent=1 // pred_check_branch
      %1325 = sbr.rel (0) target = $region17
    $region16: #{encoder_forward.1} parent=1 // pred_region
      %1327 = vsyncadd [#allocation3], 0
      %s1329 = sshll.u32 [#allocation2], 4
      %s1330 = int_to_ptr.vmem [resolvable:$true] %s1329
      %s1331 = sshll.u32 %s3, 4
      %s1332 = int_to_ptr.hbm [resolvable:$true] %s1331
      %1334 = dma.vmem_to_hbm [thread:$0]  %s1330, 32, %s1332, [#allocation3]
    $region17: #{encoder_forward.1} parent=1 // pred_fallthru
      _
    // Predicated region
    $region18: #{encoder_forward.1} parent=1 // pred_check
      _
    $region19: #{encoder_forward.1} parent=1 // pred_check_branch
      %1336 = sbr.rel (0) target = $region21
    $region20: #{encoder_forward.1} parent=1 // pred_region
      %1338 = dma.done [#allocation3], 32
    $region21: #{encoder_forward.1} parent=1 // pred_fallthru
      _
    %1339 = vsyncpa [#allocation3], 1

</llo_original>
